<compile_context>
chip_gen: v6e
topology: v6e:2x2x1
jax: 0.10.0
libtpu: 0.0.40
codegen_flags: <defaults>
</compile_context>

<pallas_src>
import functools

import jax
import jax.numpy as jnp
from jax import lax
from jax.experimental import pallas as pl
from jax.experimental.pallas import tpu as pltpu


MARGIN = 0.3


# --------------------------------------------------------------------------- #
# Shared per-tile loss math (runs inside the kernels, all f32).
# --------------------------------------------------------------------------- #
def _tile_loss(pred, pos, neg, *, total_b, total_n):
    """Additive loss contribution of one batch tile.

    pred: (TB, D) f32, pos: (TB, D) f32, neg: (TB, N, D) f32 -> scalar f32.
    Reproduces the PyTorch reference exactly, including the positive-branch
    quirk sqrt(pos**2).sum(-1) == sum(|pos|) (L1, not L2).
    """
    inv_pred_l2 = lax.rsqrt(jnp.sum(pred * pred, axis=-1, keepdims=True))     # (TB, 1)

    # ---- negative branch: mean over B*N of relu(cos(pred, neg) - margin) ----
    # Batched contraction on the MXU (flash-attention 'bqd,bkd->bqk' pattern).
    neg_top = jnp.einsum('bqd,bnd->bqn', pred[:, None, :], neg,
                         preferred_element_type=jnp.float32)[:, 0, :]          # (TB, N)
    inv_neg_l2 = lax.rsqrt(jnp.sum(neg * neg, axis=-1))                        # (TB, N)
    neg_cos = neg_top * inv_pred_l2 * inv_neg_l2                               # (TB, N)
    neg_partial = jnp.sum(jnp.maximum(neg_cos - MARGIN, 0.0)) * (
        1.0 / (total_b * total_n))

    # ---- positive branch (keeps the L1 quirk of the reference) ----
    pos_top = jnp.sum(pos * pred, axis=-1, keepdims=True)                      # (TB, 1)
    pos_l1 = jnp.sum(jnp.abs(pos), axis=-1, keepdims=True)                     # (TB, 1)
    pos_ratio = pos_top * pl.reciprocal(pos_l1, approx=True) * inv_pred_l2     # (TB, 1)
    pos_partial = jnp.sum(1.0 - pos_ratio) * (1.0 / total_b)

    return pos_partial + neg_partial


# --------------------------------------------------------------------------- #
# Kernels.
# --------------------------------------------------------------------------- #
def _fused_loss_kernel(pred_ref, labels_ref, negl_ref, table_ref, out_ref, *,
                       total_b, total_n, vocab):
    """One batch tile; gathers pos/neg rows from the VMEM-resident table.

    pred_ref  : (TB, D)     native dtype
    labels_ref: (TB, 1)     int32
    negl_ref  : (TB*N, 1)   int32 (flattened negative labels for this tile)
    table_ref : (V, D)      native dtype (grid-invariant block -> DMA'd once)
    out_ref   : (1, 8, 128) f32, per-tile partial broadcast across the block
    """
    tb, d = pred_ref.shape
    tbn = negl_ref.shape[0]

    pred = pred_ref[...].astype(jnp.float32)                                   # (TB, D)
    table = table_ref[...]                                                     # (V, D)

    # One-hot gathers on the MXU (exact: each row has a single non-zero term).
    pos_oh = (labels_ref[...] ==
              lax.broadcasted_iota(jnp.int32, (tb, vocab), 1)).astype(table.dtype)
    pos = jnp.dot(pos_oh, table, preferred_element_type=jnp.float32)           # (TB, D)

    neg_oh = (negl_ref[...] ==
              lax.broadcasted_iota(jnp.int32, (tbn, vocab), 1)).astype(table.dtype)
    neg = jnp.dot(neg_oh, table, preferred_element_type=jnp.float32)           # (TB*N, D)
    neg = neg.reshape(tb, total_n, d)                                          # last dim unchanged

    total = _tile_loss(pred, pos, neg, total_b=total_b, total_n=total_n)
    out_ref[...] = jnp.full(out_ref.shape, total, dtype=jnp.float32)


def _pregathered_loss_kernel(pred_ref, pos_ref, neg_ref, out_ref, *,
                             total_b, total_n):
    """Fallback kernel when the table cannot stay VMEM-resident."""
    total = _tile_loss(pred_ref[...].astype(jnp.float32),
                       pos_ref[...].astype(jnp.float32),
                       neg_ref[...].astype(jnp.float32),
                       total_b=total_b, total_n=total_n)
    out_ref[...] = jnp.full(out_ref.shape, total, dtype=jnp.float32)


# --------------------------------------------------------------------------- #
# VMEM accounting + tile selection.
# --------------------------------------------------------------------------- #
def _vmem_capacity_bytes():
    try:
        cap = getattr(pltpu.get_tpu_info(), "vmem_capacity_bytes", None)
        if cap:
            return int(cap)
    except Exception:
        pass
    return 64 << 20        # v7x per-TensorCore VMEM; conservative floor


def _fused_tile_bytes(tb, N, D, V, in_itemsize):
    dbuf = 2 * (tb * D * in_itemsize            # pred tile (double-buffered)
                + tb * 4                        # labels (TB, 1) int32
                + tb * N * 4)                   # neg labels (TB*N, 1) int32
    table = 2 * V * D * in_itemsize             # resident table (count both buffers)
    tmp = 4 * (tb * V                           # pos one-hot
               + tb * N * V                     # neg one-hot
               + 2 * tb * N * D                 # gathered neg rows + products
               + 3 * tb * D                     # pred/pos f32 + products
               + 6 * tb * N)                    # (TB, N) intermediates
    out = 2 * 8 * 128 * 4
    return dbuf + table + tmp + out


def _pregathered_tile_bytes(tb, N, D, in_itemsize):
    dbuf = 2 * (2 * tb * D * in_itemsize + tb * N * D * in_itemsize)
    tmp = 4 * (2 * tb * N * D + 3 * tb * D + 6 * tb * N)
    out = 2 * 8 * 128 * 4
    return dbuf + tmp + out


def _choose_batch_tile(B, bytes_for_tb, *, row_align, budget_bytes, prefer_split):
    """Largest TB with B % TB == 0, TB % row_align == 0 (or TB == B, full-extent
    block), per-tile working set within budget, and (when possible) TB <= B//2
    so the 'parallel' grid axis has >= 2 tiles for v7x dual-TC."""
    candidates = [tb for tb in range(row_align, B + 1, row_align) if B % tb == 0]
    if B % row_align != 0:
        candidates.append(B)
    candidates = sorted(set(candidates))

    def legal(tb):
        return bytes_for_tb(tb) <= budget_bytes

    cap = B // 2 if (prefer_split and any(c <= B // 2 for c in candidates)) else B
    best = None
    for tb in candidates:
        if tb <= cap and legal(tb):
            best = tb
    if best is None:
        for tb in candidates:
            if legal(tb):
                best = tb
    if best is None:
        best = min(candidates)
    return best


# --------------------------------------------------------------------------- #
# Wrapper.
# --------------------------------------------------------------------------- #
def multi_embedding_loss(pred_embs, labels, sample_neg_labels, emb_table,
                         batch_tile=None):
    """pred_embs: (B, D); labels: (B,) int; sample_neg_labels: (B, N) int;
    emb_table: (V, D).  Returns scalar float32 loss (== MultiEmbeddingLoss)."""
    B, D = pred_embs.shape
    N = sample_neg_labels.shape[1]
    V = emb_table.shape[0]

    # Keep the native (possibly bf16) dtype on the wire; promote in-kernel.
    in_dtype = jnp.promote_types(pred_embs.dtype, emb_table.dtype)
    pred_embs = pred_embs.astype(in_dtype)
    emb_table = emb_table.astype(in_dtype)
    itemsize = jnp.dtype(in_dtype).itemsize
    row_align = 8 if itemsize >= 4 else 16          # sublane rule (f32 vs packed bf16)

    vmem_cap = _vmem_capacity_bytes()
    budget = vmem_cap // 2                          # headroom for compiler scratch

    table_bytes = 2 * V * D * itemsize
    fused = table_bytes <= budget // 2              # table must stay VMEM-resident
    # TODO(synk): for tables too large for VMEM, gather rows with per-tile
    # make_async_copy DMAs from an HBM-resident (memory_space=pl.ANY) table
    # instead of the XLA-gather fallback below.

    if fused:
        bytes_for_tb = lambda tb: _fused_tile_bytes(tb, N, D, V, itemsize)
    else:
        bytes_for_tb = lambda tb: _pregathered_tile_bytes(tb, N, D, itemsize)

    if batch_tile is None:
        tb = _choose_batch_tile(B, bytes_for_tb, row_align=row_align,
                                budget_bytes=budget, prefer_split=True)
    else:
        tb = int(batch_tile)
        assert B % tb == 0 and (tb % row_align == 0 or tb == B), (B, tb, row_align)
    num_tiles = B // tb

    vmem_limit = int(min(vmem_cap - (4 << 20),
                         max(32 << 20, 2 * bytes_for_tb(tb))))
    compiler_params = pltpu.CompilerParams(
        dimension_semantics=("parallel",),
        vmem_limit_bytes=vmem_limit)

    out_shape = jax.ShapeDtypeStruct((num_tiles, 8, 128), jnp.float32)
    out_spec = pl.BlockSpec((1, 8, 128), lambda i: (i, 0, 0))

    if fused:
        labels_i32 = labels.astype(jnp.int32).reshape(B, 1)
        neg_i32 = sample_neg_labels.astype(jnp.int32).reshape(B * N, 1)
        kernel = functools.partial(_fused_loss_kernel,
                                   total_b=B, total_n=N, vocab=V)
        cost = pl.CostEstimate(
            flops=int(2 * B * V * D + 2 * B * N * V * D      # one-hot gathers (MXU)
                      + 2 * B * N * D + 6 * B * D + 8 * B * N),
            transcendentals=int(B * (N + 3)),
            bytes_accessed=int(itemsize * (B * D + V * D)
                               + 4 * (B + B * N)
                               + 4 * num_tiles * 8 * 128),
        )
        partials = pl.pallas_call(
            kernel,
            out_shape=out_shape,
            grid_spec=pltpu.PrefetchScalarGridSpec(
                num_scalar_prefetch=0,
                grid=(num_tiles,),
                in_specs=[
                    pl.BlockSpec((tb, D), lambda i: (i, 0)),        # pred
                    pl.BlockSpec((tb, 1), lambda i: (i, 0)),        # labels
                    pl.BlockSpec((tb * N, 1), lambda i: (i, 0)),    # neg labels (flat)
                    pl.BlockSpec((V, D), lambda i: (0, 0)),         # table (resident)
                ],
                out_specs=out_spec,
            ),
            compiler_params=compiler_params,
            cost_estimate=cost,
        )(pred_embs, labels_i32, neg_i32, emb_table)
    else:
        # Fallback: XLA gathers in HBM (table too large to keep VMEM-resident).
        pos_embs = emb_table[labels.astype(jnp.int32)]               # (B, D)
        neg_embs = emb_table[sample_neg_labels.astype(jnp.int32)]    # (B, N, D)
        kernel = functools.partial(_pregathered_loss_kernel, total_b=B, total_n=N)
        cost = pl.CostEstimate(
            flops=int(2 * B * N * D + 6 * B * D + 8 * B * N),
            transcendentals=int(B * (N + 3)),
            bytes_accessed=int(itemsize * (2 * B * D + B * N * D)
                               + 4 * num_tiles * 8 * 128),
        )
        partials = pl.pallas_call(
            kernel,
            out_shape=out_shape,
            grid_spec=pltpu.PrefetchScalarGridSpec(
                num_scalar_prefetch=0,
                grid=(num_tiles,),
                in_specs=[
                    pl.BlockSpec((tb, D), lambda i: (i, 0)),
                    pl.BlockSpec((tb, D), lambda i: (i, 0)),
                    pl.BlockSpec((tb, N, D), lambda i: (i, 0, 0)),
                ],
                out_specs=out_spec,
            ),
            compiler_params=compiler_params,
            cost_estimate=cost,
        )(pred_embs, pos_embs, neg_embs)

    return jnp.sum(partials[:, 0, 0])


# --------------------------------------------------------------------------- #
# Pure-JAX reference (mirrors the PyTorch module, including the L1 quirk).
# --------------------------------------------------------------------------- #
def _reference_loss(pred_embs, labels, sample_neg_labels, emb_table):
    pos = emb_table[labels]
    neg = emb_table[sample_neg_labels]
    B = pred_embs.shape[0]
    pred3 = pred_embs.reshape(B, 1, -1)
    neg_top = (pred3 * neg).sum(-1)
    neg_bottom = jnp.sqrt((pred3 ** 2).sum(-1)) * jnp.sqrt((neg ** 2).sum(-1))
    neg_loss = jnp.maximum((neg_top / neg_bottom) - MARGIN, 0.0).mean()
    pos_top = (pos * pred_embs).sum(-1)
    pos_bottom = jnp.sqrt(pos ** 2).sum(-1) * jnp.sqrt((pred_embs ** 2).sum(-1))
    pos_loss = (1.0 - pos_top / pos_bottom).mean()
    return pos_loss + neg_loss


if __name__ == "__main__":
    B, N, D, V = 32, 8, 128, 64  # batch, negatives per sample, emb dim, vocab

    key = jax.random.PRNGKey(0)
    k_pred, k_tab, k_lab, k_neg = jax.random.split(key, 4)

    emb_table = jax.random.normal(k_tab, (V, D), dtype=jnp.float32)
    pred_embs = jax.random.normal(k_pred, (B, D), dtype=jnp.float32)
    labels = jax.random.randint(k_lab, (B,), 0, V, dtype=jnp.int32)
    sample_neg_labels = jax.random.randint(k_neg, (B, N), 0, V, dtype=jnp.int32)

    ref = _reference_loss(pred_embs, labels, sample_neg_labels, emb_table)

    # Auto-chosen tile (>= 2 tiles so the 'parallel' grid axis feeds both v7x TCs).
    loss_auto = jax.block_until_ready(
        multi_embedding_loss(pred_embs, labels, sample_neg_labels, emb_table))
    assert jnp.allclose(loss_auto, ref, rtol=2e-3, atol=2e-3), (loss_auto, ref)

    # Explicit smaller tile (4 grid steps) exercises the multi-tile pipeline.
    loss_tiled = jax.block_until_ready(
        multi_embedding_loss(pred_embs, labels, sample_neg_labels, emb_table,
                             batch_tile=8))
    assert jnp.allclose(loss_tiled, ref, rtol=2e-3, atol=2e-3), (loss_tiled, ref)

    # Native-bf16 inputs: half the HBM bytes on the wire, f32 math in-kernel.
    loss_bf16 = jax.block_until_ready(
        multi_embedding_loss(pred_embs.astype(jnp.bfloat16), labels,
                             sample_neg_labels, emb_table.astype(jnp.bfloat16)))
    assert jnp.allclose(loss_bf16, ref, rtol=5e-2, atol=5e-2), (loss_bf16, ref)

    print("KERNEL_OK")
</pallas_src>

<mosaic_0001>
module attributes {stable_mosaic.version = 11 : i64} {
  func.func @_fused_loss_kernel(%arg0: i32, %arg1: memref<16x128xf32, #tpu.memory_space<vmem>>, %arg2: memref<16x1xi32, #tpu.memory_space<vmem>>, %arg3: memref<128x1xi32, #tpu.memory_space<vmem>>, %arg4: memref<64x128xf32, #tpu.memory_space<vmem>>, %arg5: memref<1x8x128xf32, #tpu.memory_space<vmem>>) attributes {dimension_semantics = [#tpu.dimension_semantics<parallel>], iteration_bounds = array<i64: 2>, scalar_prefetch = 0 : i64, scratch_operands = 0 : i64, tpu.core_type = #tpu.core_type<tc>, window_params = [{transform_indices = @transform_0, window_bounds = array<i64: 16, 128>}, {transform_indices = @transform_1, window_bounds = array<i64: 16, 1>}, {transform_indices = @transform_2, window_bounds = array<i64: 128, 1>}, {pipeline_mode = #tpu.pipeline_mode<synchronous>, transform_indices = @transform_3, window_bounds = array<i64: 64, 128>}, {transform_indices = @transform_4, window_bounds = array<i64: 1, 8, 128>}]} {
    %c0 = arith.constant 0 : index
    %c0_0 = arith.constant 0 : index
    %0 = vector.load %arg1[%c0, %c0_0] : memref<16x128xf32, #tpu.memory_space<vmem>>, vector<16x128xf32>
    %c0_1 = arith.constant 0 : index
    %c0_2 = arith.constant 0 : index
    %1 = vector.load %arg4[%c0_1, %c0_2] : memref<64x128xf32, #tpu.memory_space<vmem>>, vector<64x128xf32>
    %c0_3 = arith.constant 0 : index
    %c0_4 = arith.constant 0 : index
    %2 = vector.load %arg2[%c0_3, %c0_4] : memref<16x1xi32, #tpu.memory_space<vmem>>, vector<16x1xi32>
    %3 = tpu.iota {dimensions = array<i32: 1>} : vector<16x64xi32>
    %4 = vector.broadcast %2 : vector<16x1xi32> to vector<16x64xi32>
    %5 = arith.cmpi eq, %4, %3 : vector<16x64xi32>
    %6 = arith.extui %5 : vector<16x64xi1> to vector<16x64xi32>
    %7 = arith.sitofp %6 : vector<16x64xi32> to vector<16x64xf32>
    %cst = arith.constant dense<0.000000e+00> : vector<16x128xf32>
    %8 = tpu.matmul %7, %1, %cst {dimension_numbers = #tpu.dot_dimension_numbers<[1], [0], [0], [1], [0, 0, 1, 1], [], []>} : vector<16x64xf32>, vector<64x128xf32>, vector<16x128xf32> -> vector<16x128xf32>
    %c0_5 = arith.constant 0 : index
    %c0_6 = arith.constant 0 : index
    %9 = vector.load %arg3[%c0_5, %c0_6] : memref<128x1xi32, #tpu.memory_space<vmem>>, vector<128x1xi32>
    %10 = tpu.iota {dimensions = array<i32: 1>} : vector<128x64xi32>
    %11 = vector.broadcast %9 : vector<128x1xi32> to vector<128x64xi32>
    %12 = arith.cmpi eq, %11, %10 : vector<128x64xi32>
    %13 = arith.extui %12 : vector<128x64xi1> to vector<128x64xi32>
    %14 = arith.sitofp %13 : vector<128x64xi32> to vector<128x64xf32>
    %cst_7 = arith.constant dense<0.000000e+00> : vector<128x128xf32>
    %15 = tpu.matmul %14, %1, %cst_7 {dimension_numbers = #tpu.dot_dimension_numbers<[1], [0], [0], [1], [0, 0, 1, 1], [], []>} : vector<128x64xf32>, vector<64x128xf32>, vector<128x128xf32> -> vector<128x128xf32>
    %16 = vector.shape_cast %15 : vector<128x128xf32> to vector<16x8x128xf32>
    %17 = arith.mulf %0, %0 : vector<16x128xf32>
    %cst_8 = arith.constant dense<0.000000e+00> : vector<16xf32>
    %18 = vector.multi_reduction <add>, %17, %cst_8 [1] : vector<16x128xf32> to vector<16xf32>
    %19 = vector.shape_cast %18 : vector<16xf32> to vector<16x1xf32>
    %20 = math.rsqrt %19 : vector<16x1xf32>
    %21 = vector.shape_cast %0 : vector<16x128xf32> to vector<16x1x128xf32>
    "tpu.trace_start"() <{level = 10 : i32, message = "bqd,bnd->bqn"}> : () -> ()
    %cst_9 = arith.constant dense<0.000000e+00> : vector<16x1x8xf32>
    %22 = tpu.matmul %21, %16, %cst_9 {dimension_numbers = #tpu.dot_dimension_numbers<[2], [2], [1], [1], [0, 0, 0, 1, 1, 1], [0], [0]>} : vector<16x1x128xf32>, vector<16x8x128xf32>, vector<16x1x8xf32> -> vector<16x1x8xf32>
    "tpu.trace_stop"() : () -> ()
    %23 = vector.shape_cast %22 : vector<16x1x8xf32> to vector<16x8xf32>
    %24 = arith.mulf %16, %16 : vector<16x8x128xf32>
    %cst_10 = arith.constant dense<0.000000e+00> : vector<16x8xf32>
    %25 = vector.multi_reduction <add>, %24, %cst_10 [2] : vector<16x8x128xf32> to vector<16x8xf32>
    %26 = math.rsqrt %25 : vector<16x8xf32>
    %27 = vector.broadcast %20 : vector<16x1xf32> to vector<16x8xf32>
    %28 = arith.mulf %23, %27 : vector<16x8xf32>
    %29 = arith.mulf %28, %26 : vector<16x8xf32>
    %cst_11 = arith.constant 3.000000e-01 : f32
    %30 = vector.broadcast %cst_11 : f32 to vector<16x8xf32>
    %31 = arith.subf %29, %30 : vector<16x8xf32>
    %cst_12 = arith.constant 0.000000e+00 : f32
    %32 = vector.broadcast %cst_12 : f32 to vector<16x8xf32>
    %33 = arith.maximumf %31, %32 : vector<16x8xf32>
    %34 = vector.shape_cast %33 : vector<16x8xf32> to vector<1x16x8xf32>
    %cst_13 = arith.constant dense<0.000000e+00> : vector<1xf32>
    %35 = vector.multi_reduction <add>, %34, %cst_13 [1, 2] : vector<1x16x8xf32> to vector<1xf32>
    %36 = vector.shape_cast %35 : vector<1xf32> to vector<1x1x1xf32>
    %37 = vector.extract %36[0, 0, 0] : f32 from vector<1x1x1xf32>
    %cst_14 = arith.constant 3.906250e-03 : f32
    %38 = arith.mulf %37, %cst_14 : f32
    %39 = arith.mulf %8, %0 : vector<16x128xf32>
    %cst_15 = arith.constant dense<0.000000e+00> : vector<16xf32>
    %40 = vector.multi_reduction <add>, %39, %cst_15 [1] : vector<16x128xf32> to vector<16xf32>
    %41 = vector.shape_cast %40 : vector<16xf32> to vector<16x1xf32>
    %42 = math.absf %8 : vector<16x128xf32>
    %cst_16 = arith.constant dense<0.000000e+00> : vector<16xf32>
    %43 = vector.multi_reduction <add>, %42, %cst_16 [1] : vector<16x128xf32> to vector<16xf32>
    %44 = vector.shape_cast %43 : vector<16xf32> to vector<16x1xf32>
    %45 = tpu.reciprocal %44 {approx = true} : vector<16x1xf32> -> vector<16x1xf32>
    %46 = arith.mulf %41, %45 : vector<16x1xf32>
    %47 = arith.mulf %46, %20 : vector<16x1xf32>
    %cst_17 = arith.constant 1.000000e+00 : f32
    %48 = vector.broadcast %cst_17 : f32 to vector<16x1xf32>
    %49 = arith.subf %48, %47 : vector<16x1xf32>
    %50 = vector.shape_cast %49 : vector<16x1xf32> to vector<1x16x1xf32>
    %cst_18 = arith.constant dense<0.000000e+00> : vector<1xf32>
    %51 = vector.multi_reduction <add>, %50, %cst_18 [1, 2] : vector<1x16x1xf32> to vector<1xf32>
    %52 = vector.shape_cast %51 : vector<1xf32> to vector<1x1x1xf32>
    %53 = vector.extract %52[0, 0, 0] : f32 from vector<1x1x1xf32>
    %cst_19 = arith.constant 3.125000e-02 : f32
    %54 = arith.mulf %53, %cst_19 : f32
    %55 = arith.addf %54, %38 : f32
    %56 = vector.broadcast %55 : f32 to vector<1x8x128xf32>
    %c0_20 = arith.constant 0 : index
    %c0_21 = arith.constant 0 : index
    %c0_22 = arith.constant 0 : index
    %57 = vector.load %arg5[%c0_20, %c0_21, %c0_22] : memref<1x8x128xf32, #tpu.memory_space<vmem>>, vector<1x8x128xf32>
    tpu.vector_store %arg5[%c0_20, %c0_21, %c0_22], %56 {strides = array<i32>} : memref<1x8x128xf32, #tpu.memory_space<vmem>>, vector<1x8x128xf32>,
    return
  }
  func.func @transform_0(%arg0: i32) -> (i32, i32) {
    %c0_i32 = arith.constant 0 : i32
    %c0_i32_0 = arith.constant 0 : i32
    return %arg0, %c0_i32 : i32, i32
  }
  func.func @transform_1(%arg0: i32) -> (i32, i32) {
    %c0_i32 = arith.constant 0 : i32
    %c0_i32_0 = arith.constant 0 : i32
    return %arg0, %c0_i32 : i32, i32
  }
  func.func @transform_2(%arg0: i32) -> (i32, i32) {
    %c0_i32 = arith.constant 0 : i32
    %c0_i32_0 = arith.constant 0 : i32
    return %arg0, %c0_i32 : i32, i32
  }
  func.func @transform_3(%arg0: i32) -> (i32, i32) {
    %c0_i32 = arith.constant 0 : i32
    %c0_i32_0 = arith.constant 0 : i32
    %c0_i32_1 = arith.constant 0 : i32
    return %c0_i32, %c0_i32_0 : i32, i32
  }
  func.func @transform_4(%arg0: i32) -> (i32, i32, i32) {
    %c0_i32 = arith.constant 0 : i32
    %c0_i32_0 = arith.constant 0 : i32
    %c0_i32_1 = arith.constant 0 : i32
    return %arg0, %c0_i32, %c0_i32_0 : i32, i32, i32
  }
}

</mosaic_0001>

<llo_original>
// kernel: tpu_custom_call.1
$region0: #{tpu_custom_call.1}
  #allocation0 [shape = 'u32[]', space=smem, size = 0x4, offset = 0x4, fixed_abs, tag = 'smem constant byte address 0x4 - core index']
  #allocation1 [shape = 'u32[144,128]{1,0:T(1,128)}', space=vmem, size = 0x12000, scoped, tag = 'internal scratch']
  %s0 = inlined_call_operand.vmem [shape: f32[32,128], index: 0, kind: input, shape index: {}]
  %s1 = inlined_call_operand.vmem [shape: s32[32,1], index: 1, kind: input, shape index: {}]
  %s2 = inlined_call_operand.vmem [shape: s32[256,1], index: 2, kind: input, shape index: {}]
  %s3 = inlined_call_operand.vmem [shape: f32[64,128], index: 3, kind: input, shape index: {}]
  %s4 = inlined_call_operand.hbm [shape: f32[2,8,128], index: 4, kind: output, shape index: {}]
  %s5 = sld [smem:[#allocation0]]
  $region49: #{tpu_custom_call.1} parent=0
    _
  %s7 = ssub.s32 1, %s5
  %s8 = scalar_select 0, %s7, %s5
  $region1: #{tpu_custom_call.1} parent=0
    #allocation2 [shape = 'u8[8192]{0}', space=vmem, size = 0x2000, scoped, tag = 'output window, operand 0']
    #allocation3 [shape = 's32[2]{0}', space=sflag, size = 0x8, scoped, tag = 'scoped memory for tpu_custom_call.1']
    %9 = vsyncpa [#allocation3], 0
    %s10 = scalar_lea.sflag [#allocation3], 1
    %11 = vsyncpa %s10, 0
    loop: start=0, step=1, limit=4
    $region2: #{tpu_custom_call.1} parent=1 // loop_pre_header
      _
    $region3: #{tpu_custom_call.1} parent=1 // loop_header
      %s13 = sphi 0, %s17
      %p14 = scmp.ge.s32.totalorder %s13, 4
      %s23 = sphi 0, %s25
      %s26 = sphi 0, %s23
      %s27 = sphi 0, %s26
      %s43 = sphi 0, %s27
      %s49 = sphi 0, %s51
      %s52 = sphi 0, %s49
      %s53 = sphi 0, %s52
      %s69 = sphi 0, %s53
      %s75 = sphi 0, %s77
      %s78 = sphi 0, %s75
      %s79 = sphi 0, %s78
      %s95 = sphi 0, %s79
      %s99 = sphi 0, %s99
      %s101 = sphi 0, %s99
      %s102 = sphi 0, %s101
      %s116 = sphi 0, %s102
      %s122 = sphi 0, %s124
      %s125 = sphi 0, %s122
      %s126 = sphi 0, %s125
      %s142 = sphi 0, %s126
    $region4: #{tpu_custom_call.1} parent=1 // loop_header_branch
      %16 = sbr.rel (%p14) target = $region8
    $region5: #{tpu_custom_call.1} parent=1 // loop_body
      %s18 = ssub.s32 %s13, 1
      %s19 = ssub.s32 %s13, 2
      %s20 = sadd.s32 %s13, 1
      %s21 = ssub.s32 %s13, %s20
      %p22 = scmp.eq.s32.totalorder %s21, 0
      %s24 = sadd.s32 %s23, 1
      %s25 = scalar_select %p22, %s23, %s24
      %p28 = pneg %p22
      %p29 = scmp.eq.s32.totalorder %s13, 1
      %p30 = por %p28, %p29
      %p31 = scmp.ne.s32.totalorder %s23, %s26
      %p32 = scmp.eq.s32.totalorder %s13, 0
      %p33 = por %p31, %p32
      %p34 = scmp.ne.s32.totalorder %s23, %s26
      %p35 = scmp.eq.s32.totalorder %s18, 1
      %p36 = por %p34, %p35
      %p37 = scmp.ne.s32.totalorder %s26, %s27
      %p38 = scmp.eq.s32.totalorder %s18, 0
      %p39 = por %p37, %p38
      %p40 = scmp.ne.s32.totalorder %s26, %s27
      %p41 = scmp.eq.s32.totalorder %s19, 1
      %p42 = por %p40, %p41
      %p44 = scmp.ne.s32.totalorder %s27, %s43
      %p45 = scmp.eq.s32.totalorder %s19, 0
      %p46 = por %p44, %p45
      %s47 = ssub.s32 %s13, %s20
      %p48 = scmp.eq.s32.totalorder %s47, 0
      %s50 = sadd.s32 %s49, 1
      %s51 = scalar_select %p48, %s49, %s50
      %p54 = pneg %p48
      %p55 = scmp.eq.s32.totalorder %s13, 1
      %p56 = por %p54, %p55
      %p57 = scmp.ne.s32.totalorder %s49, %s52
      %p58 = scmp.eq.s32.totalorder %s13, 0
      %p59 = por %p57, %p58
      %p60 = scmp.ne.s32.totalorder %s49, %s52
      %p61 = scmp.eq.s32.totalorder %s18, 1
      %p62 = por %p60, %p61
      %p63 = scmp.ne.s32.totalorder %s52, %s53
      %p64 = scmp.eq.s32.totalorder %s18, 0
      %p65 = por %p63, %p64
      %p66 = scmp.ne.s32.totalorder %s52, %s53
      %p67 = scmp.eq.s32.totalorder %s19, 1
      %p68 = por %p66, %p67
      %p70 = scmp.ne.s32.totalorder %s53, %s69
      %p71 = scmp.eq.s32.totalorder %s19, 0
      %p72 = por %p70, %p71
      %s73 = ssub.s32 %s13, %s20
      %p74 = scmp.eq.s32.totalorder %s73, 0
      %s76 = sadd.s32 %s75, 1
      %s77 = scalar_select %p74, %s75, %s76
      %p80 = pneg %p74
      %p81 = scmp.eq.s32.totalorder %s13, 1
      %p82 = por %p80, %p81
      %p83 = scmp.ne.s32.totalorder %s75, %s78
      %p84 = scmp.eq.s32.totalorder %s13, 0
      %p85 = por %p83, %p84
      %p86 = scmp.ne.s32.totalorder %s75, %s78
      %p87 = scmp.eq.s32.totalorder %s18, 1
      %p88 = por %p86, %p87
      %p89 = scmp.ne.s32.totalorder %s78, %s79
      %p90 = scmp.eq.s32.totalorder %s18, 0
      %p91 = por %p89, %p90
      %p92 = scmp.ne.s32.totalorder %s78, %s79
      %p93 = scmp.eq.s32.totalorder %s19, 1
      %p94 = por %p92, %p93
      %p96 = scmp.ne.s32.totalorder %s79, %s95
      %p97 = scmp.eq.s32.totalorder %s19, 0
      %p98 = por %p96, %p97
      %s100 = sadd.s32 %s99, 1
      %p103 = scmp.eq.s32.totalorder %s13, 1
      %p104 = scmp.ne.s32.totalorder %s99, %s101
      %p105 = scmp.eq.s32.totalorder %s13, 0
      %p106 = por %p104, %p105
      %p107 = scmp.ne.s32.totalorder %s99, %s101
      %p108 = scmp.eq.s32.totalorder %s18, 1
      %p109 = por %p107, %p108
      %p110 = scmp.ne.s32.totalorder %s101, %s102
      %p111 = scmp.eq.s32.totalorder %s18, 0
      %p112 = por %p110, %p111
      %p113 = scmp.ne.s32.totalorder %s101, %s102
      %p114 = scmp.eq.s32.totalorder %s19, 1
      %p115 = por %p113, %p114
      %p117 = scmp.ne.s32.totalorder %s102, %s116
      %p118 = scmp.eq.s32.totalorder %s19, 0
      %p119 = por %p117, %p118
      %s120 = ssub.s32 %s13, %s20
      %p121 = scmp.eq.s32.totalorder %s120, 0
      %s123 = sadd.s32 %s122, 1
      %s124 = scalar_select %p121, %s122, %s123
      %p127 = pneg %p121
      %p128 = scmp.eq.s32.totalorder %s13, 1
      %p129 = por %p127, %p128
      %p130 = scmp.ne.s32.totalorder %s122, %s125
      %p131 = scmp.eq.s32.totalorder %s13, 0
      %p132 = por %p130, %p131
      %p133 = scmp.ne.s32.totalorder %s122, %s125
      %p134 = scmp.eq.s32.totalorder %s18, 1
      %p135 = por %p133, %p134
      %p136 = scmp.ne.s32.totalorder %s125, %s126
      %p137 = scmp.eq.s32.totalorder %s18, 0
      %p138 = por %p136, %p137
      %p139 = scmp.ne.s32.totalorder %s125, %s126
      %p140 = scmp.eq.s32.totalorder %s19, 1
      %p141 = por %p139, %p140
      %p143 = scmp.ne.s32.totalorder %s126, %s142
      %p144 = scmp.eq.s32.totalorder %s19, 0
      %p145 = por %p143, %p144
      %p146 = scmp.le.s32.totalorder 1, %s13
      %p147 = scmp.lt.s32.totalorder %s13, 3
      %p148 = pnand %p146, %p147
      %p149 = pneg %p148
      // Predicated region
      $region9: #{tpu_custom_call.1} parent=5 // pred_check
        _
      $region10: #{tpu_custom_call.1} parent=5 // pred_check_branch
        %151 = sbr.rel (%p148) target = $region12
      $region11: #{tpu_custom_call.1} parent=5 // pred_region
        %s152 = ssub.s32 %s13, 1
        // Predicated region
        $region13: #{tpu_custom_call.1} parent=11 // pred_check
          %p153 = pneg %p112
        $region14: #{tpu_custom_call.1} parent=11 // pred_check_branch
          %155 = sbr.rel (%p153) target = $region16
        $region15: #{tpu_custom_call.1} parent=11 // pred_region
          _
        $region16: #{tpu_custom_call.1} parent=11 // pred_fallthru
          _
      $region12: #{tpu_custom_call.1} parent=5 // pred_fallthru
        _
      %p156 = scmp.lt.s32.totalorder %s13, 2
      // Predicated region
      $region17: #{tpu_custom_call.1} parent=5 // pred_check
        %p157 = pneg %p156
      $region18: #{tpu_custom_call.1} parent=5 // pred_check_branch
        %159 = sbr.rel (%p157) target = $region20
      $region19: #{tpu_custom_call.1} parent=5 // pred_region
        // Predicated region
        $region21: #{tpu_custom_call.1} parent=19 // pred_check
          %p160 = pneg %p33
        $region22: #{tpu_custom_call.1} parent=19 // pred_check_branch
          %162 = sbr.rel (%p160) target = $region24
        $region23: #{tpu_custom_call.1} parent=19 // pred_region
          %s163 = smul.u32 2, %s13
          %p164 = scmp.lt.s32.totalorder %s163, 3
          %s165 = scalar_select %p164, %s163, 3
          %s166 = smul.addr %s165, 8
          %s167 = scalar_lea.vmem %s0, %s166
          %s168 = smul.u32 2, %s13
        $region24: #{tpu_custom_call.1} parent=19 // pred_fallthru
          _
        // Predicated region
        $region25: #{tpu_custom_call.1} parent=19 // pred_check
          %p169 = pneg %p59
        $region26: #{tpu_custom_call.1} parent=19 // pred_check_branch
          %171 = sbr.rel (%p169) target = $region28
        $region27: #{tpu_custom_call.1} parent=19 // pred_region
          %s172 = smul.u32 2, %s13
          %p173 = scmp.lt.s32.totalorder %s172, 3
          %s174 = scalar_select %p173, %s172, 3
          %s175 = smul.addr %s174, 8
          %s176 = scalar_lea.vmem %s1, %s175
          %s177 = smul.u32 2, %s13
        $region28: #{tpu_custom_call.1} parent=19 // pred_fallthru
          _
        // Predicated region
        $region29: #{tpu_custom_call.1} parent=19 // pred_check
          %p178 = pneg %p85
        $region30: #{tpu_custom_call.1} parent=19 // pred_check_branch
          %180 = sbr.rel (%p178) target = $region32
        $region31: #{tpu_custom_call.1} parent=19 // pred_region
          %s181 = smul.u32 16, %s13
          %p182 = scmp.lt.s32.totalorder %s181, 31
          %s183 = scalar_select %p182, %s181, 31
          %s184 = smul.addr %s183, 8
          %s185 = scalar_lea.vmem %s2, %s184
          %s186 = smul.u32 16, %s13
        $region32: #{tpu_custom_call.1} parent=19 // pred_fallthru
          _
      $region20: #{tpu_custom_call.1} parent=5 // pred_fallthru
        _
      %p187 = scmp.le.s32.totalorder 1, %s13
      %p188 = scmp.lt.s32.totalorder %s13, 3
      %p189 = pnand %p187, %p188
      %p190 = pneg %p189
      // Predicated region
      $region33: #{tpu_custom_call.1} parent=5 // pred_check
        _
      $region34: #{tpu_custom_call.1} parent=5 // pred_check_branch
        %192 = sbr.rel (%p189) target = $region36
      $region35: #{tpu_custom_call.1} parent=5 // pred_region
        %s193 = ssub.s32 %s13, 1
        %s194 = smul.u32 2, %s18
        %p195 = scmp.lt.s32.totalorder %s194, 3
        %s196 = scalar_select %p195, %s194, 3
        %s197 = smul.addr %s196, 8
        %s198 = scalar_lea.vmem %s0, %s197
        %p199 = pneg %p39
        %p200 = pneg %p36
        %s201 = smul.u32 2, %s18
        %p202 = scmp.lt.s32.totalorder %s201, 3
        %s203 = scalar_select %p202, %s201, 3
        %s204 = smul.addr %s203, 8
        %s205 = scalar_lea.vmem %s1, %s204
        %p206 = pneg %p65
        %p207 = pneg %p62
        %s208 = smul.u32 16, %s18
        %p209 = scmp.lt.s32.totalorder %s208, 31
        %s210 = scalar_select %p209, %s208, 31
        %s211 = smul.addr %s210, 8
        %s212 = scalar_lea.vmem %s2, %s211
        %p213 = pneg %p91
        %p214 = pneg %p88
        %p215 = pneg %p112
        %p216 = pneg %p109
        %p217 = pneg %p138
        %p218 = pneg %p135
        %s219 = sand.u32 %s125, 1
        %s220 = scalar_lea.sflag [#allocation3], %s219
        %s221 = sand.u32 %s125, 1
        %s222 = smul.addr %s221, 8
        %s223 = scalar_lea.vmem [#allocation2], %s222
        %s224 = smul.u32 2, %s18
        %p225 = scmp.lt.s32.totalorder %s224, 3
        %s226 = scalar_select %p225, %s224, 3
        %s227 = smul.addr %s226, 8
        %s228 = scalar_lea.vmem %s0, %s227
        %s229 = smul.u32 2, %s18
        %s230 = smul.u32 2, %s18
        %p231 = scmp.lt.s32.totalorder %s230, 3
        %s232 = scalar_select %p231, %s230, 3
        %s233 = smul.addr %s232, 8
        %s234 = scalar_lea.vmem %s1, %s233
        %s235 = smul.u32 2, %s18
        %s236 = smul.u32 16, %s18
        %p237 = scmp.lt.s32.totalorder %s236, 31
        %s238 = scalar_select %p237, %s236, 31
        %s239 = smul.addr %s238, 8
        %s240 = scalar_lea.vmem %s2, %s239
        %s241 = smul.u32 16, %s18
        %v242 = vld [vmem:[%s228] sm:$0xff]
        %v243 = vld [vmem:[%s228 + $0x8] sm:$0xff]
        %v244 = vld [vmem:[%s3] sm:$0xff]
        %v245 = vld [vmem:[%s3 + $0x8] sm:$0xff]
        %v246 = vld [vmem:[%s3 + $0x10] sm:$0xff]
        %v247 = vld [vmem:[%s3 + $0x18] sm:$0xff]
        %v248 = vld [vmem:[%s3 + $0x20] sm:$0xff]
        %v249 = vld [vmem:[%s3 + $0x28] sm:$0xff]
        %v250 = vld [vmem:[%s3 + $0x30] sm:$0xff]
        %v251 = vld [vmem:[%s3 + $0x38] sm:$0xff]
        %v252 = vld [vmem:[%s234] sm:$0xff]
        %v253 = vld [vmem:[%s234 + $0x8] sm:$0xff]
        %v254 = vlaneseq
        %v255 = vand.u32 %v254, 127
        %256 = vset.pattern.permute.xlu0 0
        %257 = vperm.xlu0 %256, %v252
        %v258 = vpop.permute.xlu0 %257
        %259 = vset.pattern.permute.xlu0 0
        %260 = vperm.xlu0 %259, %v253
        %v261 = vpop.permute.xlu0 %260
        %vm262 = vcmp.eq.s32.totalorder %v258, %v255
        %vm263 = vcmp.eq.s32.totalorder %v261, %v255
        %v264 = vsel %vm262, 1, 0
        %v265 = vsel %vm263, 1, 0
        %v266 = vcvt.s32.f32 %v264
        %v267 = vcvt.s32.f32 %v265
        %vm268 = vcmask 523264
        %v270 = vsel %vm268, %v266, 0
        %v273 = vsel %vm268, %v267, 0
        %275 = vmatprep.subr.mxu0 0.0
        %276 = vmatpush1.msra.mxu0 0.0
        %277 = vmatprep.subr.mxu0 0.0
        %278 = vmatpush1.msra.mxu0 0.0
        %279 = vmatprep.subr.mxu0 0.0
        %280 = vmatpush1.msra.mxu0 0.0
        %281 = vmatprep.subr.mxu0 0.0
        %282 = vmatpush1.msra.mxu0 0.0
        %283 = vmatprep.subr.mxu0 0.0
        %284 = vmatpush1.msra.mxu0 0.0
        %285 = vmatprep.subr.mxu0 0.0
        %286 = vmatpush1.msra.mxu0 0.0
        %287 = vmatprep.subr.mxu0 0.0
        %288 = vmatpush1.msra.mxu0 0.0
        %289 = vmatprep.subr.mxu0 0.0
        %290 = vmatpush1.msra.mxu0 0.0
        %291 = vmatprep.subr.mxu0 0.0
        %292 = vmatpush1.msra.mxu0 %v251
        %293 = vmatprep.subr.mxu0 0.0
        %294 = vmatpush1.msra.mxu0 %v250
        %295 = vmatprep.subr.mxu0 0.0
        %296 = vmatpush1.msra.mxu0 %v249
        %297 = vmatprep.subr.mxu0 0.0
        %298 = vmatpush1.msra.mxu0 %v248
        %299 = vmatprep.subr.mxu0 0.0
        %300 = vmatpush1.msra.mxu0 %v247
        %301 = vmatprep.subr.mxu0 0.0
        %302 = vmatpush1.msra.mxu0 %v246
        %303 = vmatprep.subr.mxu0 0.0
        %304 = vmatpush1.msra.mxu0 %v245
        %305 = vmatprep.subr.mxu0 0.0
        %306 = vmatpush1.msra.mxu0 %v244
        %307 = vmatprep.subr.mxu0 0.0
        %308 = vmatpush2.msra.mxu0 0.0
        %309 = vmatprep.subr.mxu0 0.0
        %310 = vmatpush2.msra.mxu0 0.0
        %311 = vmatprep.subr.mxu0 0.0
        %312 = vmatpush2.msra.mxu0 0.0
        %313 = vmatprep.subr.mxu0 0.0
        %314 = vmatpush2.msra.mxu0 0.0
        %315 = vmatprep.subr.mxu0 0.0
        %316 = vmatpush2.msra.mxu0 0.0
        %317 = vmatprep.subr.mxu0 0.0
        %318 = vmatpush2.msra.mxu0 0.0
        %319 = vmatprep.subr.mxu0 0.0
        %320 = vmatpush2.msra.mxu0 0.0
        %321 = vmatprep.subr.mxu0 0.0
        %322 = vmatpush2.msra.mxu0 0.0
        %323 = vmatprep.subr.mxu0 0.0
        %324 = vmatpush2.msra.mxu0 0.0
        %325 = vmatprep.subr.mxu0 0.0
        %326 = vmatpush2.msra.mxu0 0.0
        %327 = vmatprep.subr.mxu0 0.0
        %328 = vmatpush2.msra.mxu0 0.0
        %329 = vmatprep.subr.mxu0 0.0
        %330 = vmatpush2.msra.mxu0 0.0
        %331 = vmatprep.subr.mxu0 0.0
        %332 = vmatpush2.msra.mxu0 0.0
        %333 = vmatprep.subr.mxu0 0.0
        %334 = vmatpush2.msra.mxu0 0.0
        %335 = vmatprep.subr.mxu0 0.0
        %336 = vmatpush2.msra.mxu0 0.0
        %337 = vmatprep.subr.mxu0 0.0
        %338 = vmatpush2.msra.mxu0 0.0
        %339 = vmatprep.mubr.f32.mxu0 0.0
        %340 = vmatmul.mubr.f32.gmra.mxu0 %v270
        %v341 = vpop.f32.mrf.mxu0
        %v342 = vadd.f32 0.0, %v341
        %v343 = vpop.f32.mrf.mxu0
        %344 = vmatprep.mubr.f32.mxu0 0.0
        %345 = vmatmul.mubr.f32.gmra.mxu0 %v273
        %v346 = vpop.f32.mrf.mxu0
        %v347 = vadd.f32 0.0, %v346
        %v348 = vpop.f32.mrf.mxu0
        %349 = vdwg.mxu0
        %v350 = vld [vmem:[%s240] sm:$0xff]
        %v351 = vld [vmem:[%s240 + $0x8] sm:$0xff]
        %v352 = vld [vmem:[%s240 + $0x10] sm:$0xff]
        %v353 = vld [vmem:[%s240 + $0x18] sm:$0xff]
        %v354 = vld [vmem:[%s240 + $0x20] sm:$0xff]
        %v355 = vld [vmem:[%s240 + $0x28] sm:$0xff]
        %v356 = vld [vmem:[%s240 + $0x30] sm:$0xff]
        %v357 = vld [vmem:[%s240 + $0x38] sm:$0xff]
        %v358 = vld [vmem:[%s240 + $0x40] sm:$0xff]
        %v359 = vld [vmem:[%s240 + $0x48] sm:$0xff]
        %v360 = vld [vmem:[%s240 + $0x50] sm:$0xff]
        %v361 = vld [vmem:[%s240 + $0x58] sm:$0xff]
        %v362 = vld [vmem:[%s240 + $0x60] sm:$0xff]
        %v363 = vld [vmem:[%s240 + $0x68] sm:$0xff]
        %v364 = vld [vmem:[%s240 + $0x70] sm:$0xff]
        %v365 = vld [vmem:[%s240 + $0x78] sm:$0xff]
        %366 = vset.pattern.permute.xlu0 0
        %367 = vperm.xlu0 %366, %v350
        %v368 = vpop.permute.xlu0 %367
        %369 = vset.pattern.permute.xlu0 0
        %370 = vperm.xlu0 %369, %v351
        %v371 = vpop.permute.xlu0 %370
        %372 = vset.pattern.permute.xlu0 0
        %373 = vperm.xlu0 %372, %v352
        %v374 = vpop.permute.xlu0 %373
        %375 = vset.pattern.permute.xlu0 0
        %376 = vperm.xlu0 %375, %v353
        %v377 = vpop.permute.xlu0 %376
        %378 = vset.pattern.permute.xlu0 0
        %379 = vperm.xlu0 %378, %v354
        %v380 = vpop.permute.xlu0 %379
        %381 = vset.pattern.permute.xlu0 0
        %382 = vperm.xlu0 %381, %v355
        %v383 = vpop.permute.xlu0 %382
        %384 = vset.pattern.permute.xlu0 0
        %385 = vperm.xlu0 %384, %v356
        %v386 = vpop.permute.xlu0 %385
        %387 = vset.pattern.permute.xlu0 0
        %388 = vperm.xlu0 %387, %v357
        %v389 = vpop.permute.xlu0 %388
        %390 = vset.pattern.permute.xlu0 0
        %391 = vperm.xlu0 %390, %v358
        %v392 = vpop.permute.xlu0 %391
        %393 = vset.pattern.permute.xlu0 0
        %394 = vperm.xlu0 %393, %v359
        %v395 = vpop.permute.xlu0 %394
        %396 = vset.pattern.permute.xlu0 0
        %397 = vperm.xlu0 %396, %v360
        %v398 = vpop.permute.xlu0 %397
        %399 = vset.pattern.permute.xlu0 0
        %400 = vperm.xlu0 %399, %v361
        %v401 = vpop.permute.xlu0 %400
        %402 = vset.pattern.permute.xlu0 0
        %403 = vperm.xlu0 %402, %v362
        %v404 = vpop.permute.xlu0 %403
        %405 = vset.pattern.permute.xlu0 0
        %406 = vperm.xlu0 %405, %v363
        %v407 = vpop.permute.xlu0 %406
        %408 = vset.pattern.permute.xlu0 0
        %409 = vperm.xlu0 %408, %v364
        %v410 = vpop.permute.xlu0 %409
        %411 = vset.pattern.permute.xlu0 0
        %412 = vperm.xlu0 %411, %v365
        %v413 = vpop.permute.xlu0 %412
        %vm414 = vcmp.eq.s32.totalorder %v368, %v255
        %vm415 = vcmp.eq.s32.totalorder %v371, %v255
        %vm416 = vcmp.eq.s32.totalorder %v374, %v255
        %vm417 = vcmp.eq.s32.totalorder %v377, %v255
        %vm418 = vcmp.eq.s32.totalorder %v380, %v255
        %vm419 = vcmp.eq.s32.totalorder %v383, %v255
        %vm420 = vcmp.eq.s32.totalorder %v386, %v255
        %vm421 = vcmp.eq.s32.totalorder %v389, %v255
        %vm422 = vcmp.eq.s32.totalorder %v392, %v255
        %vm423 = vcmp.eq.s32.totalorder %v395, %v255
        %vm424 = vcmp.eq.s32.totalorder %v398, %v255
        %vm425 = vcmp.eq.s32.totalorder %v401, %v255
        %vm426 = vcmp.eq.s32.totalorder %v404, %v255
        %vm427 = vcmp.eq.s32.totalorder %v407, %v255
        %vm428 = vcmp.eq.s32.totalorder %v410, %v255
        %vm429 = vcmp.eq.s32.totalorder %v413, %v255
        %v430 = vsel %vm414, 1, 0
        %v431 = vsel %vm415, 1, 0
        %v432 = vsel %vm416, 1, 0
        %v433 = vsel %vm417, 1, 0
        %v434 = vsel %vm418, 1, 0
        %v435 = vsel %vm419, 1, 0
        %v436 = vsel %vm420, 1, 0
        %v437 = vsel %vm421, 1, 0
        %v438 = vsel %vm422, 1, 0
        %v439 = vsel %vm423, 1, 0
        %v440 = vsel %vm424, 1, 0
        %v441 = vsel %vm425, 1, 0
        %v442 = vsel %vm426, 1, 0
        %v443 = vsel %vm427, 1, 0
        %v444 = vsel %vm428, 1, 0
        %v445 = vsel %vm429, 1, 0
        %v446 = vcvt.s32.f32 %v430
        %v447 = vcvt.s32.f32 %v431
        %v448 = vcvt.s32.f32 %v432
        %v449 = vcvt.s32.f32 %v433
        %v450 = vcvt.s32.f32 %v434
        %v451 = vcvt.s32.f32 %v435
        %v452 = vcvt.s32.f32 %v436
        %v453 = vcvt.s32.f32 %v437
        %v454 = vcvt.s32.f32 %v438
        %v455 = vcvt.s32.f32 %v439
        %v456 = vcvt.s32.f32 %v440
        %v457 = vcvt.s32.f32 %v441
        %v458 = vcvt.s32.f32 %v442
        %v459 = vcvt.s32.f32 %v443
        %v460 = vcvt.s32.f32 %v444
        %v461 = vcvt.s32.f32 %v445
        %v463 = vsel %vm268, %v446, 0
        %v466 = vsel %vm268, %v447, 0
        %v469 = vsel %vm268, %v448, 0
        %v472 = vsel %vm268, %v449, 0
        %v475 = vsel %vm268, %v450, 0
        %v478 = vsel %vm268, %v451, 0
        %v481 = vsel %vm268, %v452, 0
        %v484 = vsel %vm268, %v453, 0
        %v487 = vsel %vm268, %v454, 0
        %v490 = vsel %vm268, %v455, 0
        %v493 = vsel %vm268, %v456, 0
        %v496 = vsel %vm268, %v457, 0
        %v499 = vsel %vm268, %v458, 0
        %v502 = vsel %vm268, %v459, 0
        %v505 = vsel %vm268, %v460, 0
        %v508 = vsel %vm268, %v461, 0
        %510 = vmatprep.subr.mxu0 0.0
        %511 = vmatpush1.msra.mxu0 0.0
        %512 = vmatprep.subr.mxu0 0.0
        %513 = vmatpush1.msra.mxu0 0.0
        %514 = vmatprep.subr.mxu0 0.0
        %515 = vmatpush1.msra.mxu0 0.0
        %516 = vmatprep.subr.mxu0 0.0
        %517 = vmatpush1.msra.mxu0 0.0
        %518 = vmatprep.subr.mxu0 0.0
        %519 = vmatpush1.msra.mxu0 0.0
        %520 = vmatprep.subr.mxu0 0.0
        %521 = vmatpush1.msra.mxu0 0.0
        %522 = vmatprep.subr.mxu0 0.0
        %523 = vmatpush1.msra.mxu0 0.0
        %524 = vmatprep.subr.mxu0 0.0
        %525 = vmatpush1.msra.mxu0 0.0
        %526 = vmatprep.subr.mxu0 0.0
        %527 = vmatpush1.msra.mxu0 %v251
        %528 = vmatprep.subr.mxu0 0.0
        %529 = vmatpush1.msra.mxu0 %v250
        %530 = vmatprep.subr.mxu0 0.0
        %531 = vmatpush1.msra.mxu0 %v249
        %532 = vmatprep.subr.mxu0 0.0
        %533 = vmatpush1.msra.mxu0 %v248
        %534 = vmatprep.subr.mxu0 0.0
        %535 = vmatpush1.msra.mxu0 %v247
        %536 = vmatprep.subr.mxu0 0.0
        %537 = vmatpush1.msra.mxu0 %v246
        %538 = vmatprep.subr.mxu0 0.0
        %539 = vmatpush1.msra.mxu0 %v245
        %540 = vmatprep.subr.mxu0 0.0
        %541 = vmatpush1.msra.mxu0 %v244
        %542 = vmatprep.subr.mxu0 0.0
        %543 = vmatpush2.msra.mxu0 0.0
        %544 = vmatprep.subr.mxu0 0.0
        %545 = vmatpush2.msra.mxu0 0.0
        %546 = vmatprep.subr.mxu0 0.0
        %547 = vmatpush2.msra.mxu0 0.0
        %548 = vmatprep.subr.mxu0 0.0
        %549 = vmatpush2.msra.mxu0 0.0
        %550 = vmatprep.subr.mxu0 0.0
        %551 = vmatpush2.msra.mxu0 0.0
        %552 = vmatprep.subr.mxu0 0.0
        %553 = vmatpush2.msra.mxu0 0.0
        %554 = vmatprep.subr.mxu0 0.0
        %555 = vmatpush2.msra.mxu0 0.0
        %556 = vmatprep.subr.mxu0 0.0
        %557 = vmatpush2.msra.mxu0 0.0
        %558 = vmatprep.subr.mxu0 0.0
        %559 = vmatpush2.msra.mxu0 0.0
        %560 = vmatprep.subr.mxu0 0.0
        %561 = vmatpush2.msra.mxu0 0.0
        %562 = vmatprep.subr.mxu0 0.0
        %563 = vmatpush2.msra.mxu0 0.0
        %564 = vmatprep.subr.mxu0 0.0
        %565 = vmatpush2.msra.mxu0 0.0
        %566 = vmatprep.subr.mxu0 0.0
        %567 = vmatpush2.msra.mxu0 0.0
        %568 = vmatprep.subr.mxu0 0.0
        %569 = vmatpush2.msra.mxu0 0.0
        %570 = vmatprep.subr.mxu0 0.0
        %571 = vmatpush2.msra.mxu0 0.0
        %572 = vmatprep.subr.mxu0 0.0
        %573 = vmatpush2.msra.mxu0 0.0
        %574 = vmatprep.mubr.f32.mxu0 0.0
        %575 = vmatmul.mubr.f32.gmra.mxu0 %v463
        %v576 = vpop.f32.mrf.mxu0
        %v577 = vadd.f32 0.0, %v576
        %v578 = vpop.f32.mrf.mxu0
        %579 = vmatprep.mubr.f32.mxu0 0.0
        %580 = vmatmul.mubr.f32.gmra.mxu0 %v466
        %v581 = vpop.f32.mrf.mxu0
        %v582 = vadd.f32 0.0, %v581
        %v583 = vpop.f32.mrf.mxu0
        %584 = vmatprep.mubr.f32.mxu0 0.0
        %585 = vmatmul.mubr.f32.gmra.mxu0 %v469
        %v586 = vpop.f32.mrf.mxu0
        %v587 = vadd.f32 0.0, %v586
        %v588 = vpop.f32.mrf.mxu0
        %589 = vmatprep.mubr.f32.mxu0 0.0
        %590 = vmatmul.mubr.f32.gmra.mxu0 %v472
        %v591 = vpop.f32.mrf.mxu0
        %v592 = vadd.f32 0.0, %v591
        %v593 = vpop.f32.mrf.mxu0
        %594 = vmatprep.mubr.f32.mxu0 0.0
        %595 = vmatmul.mubr.f32.gmra.mxu0 %v475
        %v596 = vpop.f32.mrf.mxu0
        %v597 = vadd.f32 0.0, %v596
        %v598 = vpop.f32.mrf.mxu0
        %599 = vmatprep.mubr.f32.mxu0 0.0
        %600 = vmatmul.mubr.f32.gmra.mxu0 %v478
        %v601 = vpop.f32.mrf.mxu0
        %v602 = vadd.f32 0.0, %v601
        %v603 = vpop.f32.mrf.mxu0
        %604 = vmatprep.mubr.f32.mxu0 0.0
        %605 = vmatmul.mubr.f32.gmra.mxu0 %v481
        %v606 = vpop.f32.mrf.mxu0
        %v607 = vadd.f32 0.0, %v606
        %v608 = vpop.f32.mrf.mxu0
        %609 = vmatprep.mubr.f32.mxu0 0.0
        %610 = vmatmul.mubr.f32.gmra.mxu0 %v484
        %v611 = vpop.f32.mrf.mxu0
        %v612 = vadd.f32 0.0, %v611
        %v613 = vpop.f32.mrf.mxu0
        %614 = vmatprep.mubr.f32.mxu0 0.0
        %615 = vmatmul.mubr.f32.gmra.mxu0 %v487
        %v616 = vpop.f32.mrf.mxu0
        %v617 = vadd.f32 0.0, %v616
        %v618 = vpop.f32.mrf.mxu0
        %619 = vmatprep.mubr.f32.mxu0 0.0
        %620 = vmatmul.mubr.f32.gmra.mxu0 %v490
        %v621 = vpop.f32.mrf.mxu0
        %v622 = vadd.f32 0.0, %v621
        %v623 = vpop.f32.mrf.mxu0
        %624 = vmatprep.mubr.f32.mxu0 0.0
        %625 = vmatmul.mubr.f32.gmra.mxu0 %v493
        %v626 = vpop.f32.mrf.mxu0
        %v627 = vadd.f32 0.0, %v626
        %v628 = vpop.f32.mrf.mxu0
        %629 = vmatprep.mubr.f32.mxu0 0.0
        %630 = vmatmul.mubr.f32.gmra.mxu0 %v496
        %v631 = vpop.f32.mrf.mxu0
        %v632 = vadd.f32 0.0, %v631
        %v633 = vpop.f32.mrf.mxu0
        %634 = vmatprep.mubr.f32.mxu0 0.0
        %635 = vmatmul.mubr.f32.gmra.mxu0 %v499
        %v636 = vpop.f32.mrf.mxu0
        %v637 = vadd.f32 0.0, %v636
        %v638 = vpop.f32.mrf.mxu0
        %639 = vmatprep.mubr.f32.mxu0 0.0
        %640 = vmatmul.mubr.f32.gmra.mxu0 %v502
        %v641 = vpop.f32.mrf.mxu0
        %v642 = vadd.f32 0.0, %v641
        %v643 = vpop.f32.mrf.mxu0
        %644 = vmatprep.mubr.f32.mxu0 0.0
        %645 = vmatmul.mubr.f32.gmra.mxu0 %v505
        %v646 = vpop.f32.mrf.mxu0
        %v647 = vadd.f32 0.0, %v646
        %v648 = vpop.f32.mrf.mxu0
        %649 = vmatprep.mubr.f32.mxu0 0.0
        %650 = vmatmul.mubr.f32.gmra.mxu0 %v508
        %v651 = vpop.f32.mrf.mxu0
        %v652 = vadd.f32 0.0, %v651
        %v653 = vpop.f32.mrf.mxu0
        %654 = vdwg.mxu0
        %v655 = vmul.f32 %v242, %v242
        %v656 = vmul.f32 %v243, %v243
        %657 = vadd.xlane.f32.xlu0 %v655
        %v658 = vpop.xlane.xlu0 %657
        %659 = vadd.xlane.f32.xlu0 %v656
        %v660 = vpop.xlane.xlu0 %659
        %v661 = vrsqrt.pop %v658
        %v662 = vrsqrt.pop %v660
        %v665 = vcombine.high %v242, %v242
        %v667 = vunpack.c.l.s4 1966171168
        %v668 = vunpack.c.0.s8 %v667
        %v669 = vlaneseq
        %v670 = vshrl.u32 %v669, 7
        %v671 = vsub.s32 %v668, %v670
        %v672 = vrot.slane %v242, %v671
        %v674 = vunpack.c.l.s4 1966171168
        %v675 = vunpack.c.0.s8 %v674
        %v676 = vlaneseq
        %v677 = vshrl.u32 %v676, 7
        %v678 = vsub.s32 %v675, %v677
        %v679 = vrot.slane %v665, %v678
        %v680 = vcombine.high %v672, %v672
        %v681 = vcombine.high %v679, %v679
        %v683 = vunpack.c.l.s4 1966171168
        %v684 = vunpack.c.0.s8 %v683
        %v685 = vlaneseq
        %v686 = vshrl.u32 %v685, 7
        %v687 = vsub.s32 %v684, %v686
        %v688 = vrot.slane %v672, %v687
        %v690 = vunpack.c.l.s4 1966171168
        %v691 = vunpack.c.0.s8 %v690
        %v692 = vlaneseq
        %v693 = vshrl.u32 %v692, 7
        %v694 = vsub.s32 %v691, %v693
        %v695 = vrot.slane %v679, %v694
        %v697 = vunpack.c.l.s4 1966171168
        %v698 = vunpack.c.0.s8 %v697
        %v699 = vlaneseq
        %v700 = vshrl.u32 %v699, 7
        %v701 = vsub.s32 %v698, %v700
        %v702 = vrot.slane %v680, %v701
        %v704 = vunpack.c.l.s4 1966171168
        %v705 = vunpack.c.0.s8 %v704
        %v706 = vlaneseq
        %v707 = vshrl.u32 %v706, 7
        %v708 = vsub.s32 %v705, %v707
        %v709 = vrot.slane %v681, %v708
        %v710 = vcombine.high %v688, %v688
        %v711 = vcombine.high %v695, %v695
        %v712 = vcombine.high %v702, %v702
        %v713 = vcombine.high %v709, %v709
        %v714 = vcombine.high %v243, %v243
        %v716 = vunpack.c.l.s4 1966171168
        %v717 = vunpack.c.0.s8 %v716
        %v718 = vlaneseq
        %v719 = vshrl.u32 %v718, 7
        %v720 = vsub.s32 %v717, %v719
        %v721 = vrot.slane %v243, %v720
        %v723 = vunpack.c.l.s4 1966171168
        %v724 = vunpack.c.0.s8 %v723
        %v725 = vlaneseq
        %v726 = vshrl.u32 %v725, 7
        %v727 = vsub.s32 %v724, %v726
        %v728 = vrot.slane %v714, %v727
        %v729 = vcombine.high %v721, %v721
        %v730 = vcombine.high %v728, %v728
        %v732 = vunpack.c.l.s4 1966171168
        %v733 = vunpack.c.0.s8 %v732
        %v734 = vlaneseq
        %v735 = vshrl.u32 %v734, 7
        %v736 = vsub.s32 %v733, %v735
        %v737 = vrot.slane %v721, %v736
        %v739 = vunpack.c.l.s4 1966171168
        %v740 = vunpack.c.0.s8 %v739
        %v741 = vlaneseq
        %v742 = vshrl.u32 %v741, 7
        %v743 = vsub.s32 %v740, %v742
        %v744 = vrot.slane %v728, %v743
        %v746 = vunpack.c.l.s4 1966171168
        %v747 = vunpack.c.0.s8 %v746
        %v748 = vlaneseq
        %v749 = vshrl.u32 %v748, 7
        %v750 = vsub.s32 %v747, %v749
        %v751 = vrot.slane %v729, %v750
        %v753 = vunpack.c.l.s4 1966171168
        %v754 = vunpack.c.0.s8 %v753
        %v755 = vlaneseq
        %v756 = vshrl.u32 %v755, 7
        %v757 = vsub.s32 %v754, %v756
        %v758 = vrot.slane %v730, %v757
        %v759 = vcombine.high %v737, %v737
        %v760 = vcombine.high %v744, %v744
        %v761 = vcombine.high %v751, %v751
        %v762 = vcombine.high %v758, %v758
        %779 = vmatprep.subr.mxu0 0.0
        %780 = vmatpush1.xpose.msra.mxu0 0.0
        %781 = vmatprep.subr.mxu0 0.0
        %782 = vmatpush1.xpose.msra.mxu0 0.0
        %783 = vmatprep.subr.mxu0 0.0
        %784 = vmatpush1.xpose.msra.mxu0 0.0
        %785 = vmatprep.subr.mxu0 0.0
        %786 = vmatpush1.xpose.msra.mxu0 0.0
        %787 = vmatprep.subr.mxu0 0.0
        %788 = vmatpush1.xpose.msra.mxu0 0.0
        %789 = vmatprep.subr.mxu0 0.0
        %790 = vmatpush1.xpose.msra.mxu0 0.0
        %791 = vmatprep.subr.mxu0 0.0
        %792 = vmatpush1.xpose.msra.mxu0 0.0
        %793 = vmatprep.subr.mxu0 0.0
        %794 = vmatpush1.xpose.msra.mxu0 0.0
        %795 = vmatprep.subr.mxu0 0.0
        %796 = vmatpush1.xpose.msra.mxu0 0.0
        %797 = vmatprep.subr.mxu0 0.0
        %798 = vmatpush1.xpose.msra.mxu0 0.0
        %799 = vmatprep.subr.mxu0 0.0
        %800 = vmatpush1.xpose.msra.mxu0 0.0
        %801 = vmatprep.subr.mxu0 0.0
        %802 = vmatpush1.xpose.msra.mxu0 0.0
        %803 = vmatprep.subr.mxu0 0.0
        %804 = vmatpush1.xpose.msra.mxu0 0.0
        %805 = vmatprep.subr.mxu0 0.0
        %806 = vmatpush1.xpose.msra.mxu0 0.0
        %807 = vmatprep.subr.mxu0 0.0
        %808 = vmatpush1.xpose.msra.mxu0 0.0
        %809 = vmatprep.subr.mxu0 0.0
        %810 = vmatpush1.xpose.msra.mxu0 %v577
        %811 = vmatprep.subr.mxu0 0.0
        %812 = vmatpush2.xpose.msra.mxu0 0.0
        %813 = vmatprep.subr.mxu0 0.0
        %814 = vmatpush2.xpose.msra.mxu0 0.0
        %815 = vmatprep.subr.mxu0 0.0
        %816 = vmatpush2.xpose.msra.mxu0 0.0
        %817 = vmatprep.subr.mxu0 0.0
        %818 = vmatpush2.xpose.msra.mxu0 0.0
        %819 = vmatprep.subr.mxu0 0.0
        %820 = vmatpush2.xpose.msra.mxu0 0.0
        %821 = vmatprep.subr.mxu0 0.0
        %822 = vmatpush2.xpose.msra.mxu0 0.0
        %823 = vmatprep.subr.mxu0 0.0
        %824 = vmatpush2.xpose.msra.mxu0 0.0
        %825 = vmatprep.subr.mxu0 0.0
        %826 = vmatpush2.xpose.msra.mxu0 0.0
        %827 = vmatprep.subr.mxu0 0.0
        %828 = vmatpush2.xpose.msra.mxu0 0.0
        %829 = vmatprep.subr.mxu0 0.0
        %830 = vmatpush2.xpose.msra.mxu0 0.0
        %831 = vmatprep.subr.mxu0 0.0
        %832 = vmatpush2.xpose.msra.mxu0 0.0
        %833 = vmatprep.subr.mxu0 0.0
        %834 = vmatpush2.xpose.msra.mxu0 0.0
        %835 = vmatprep.subr.mxu0 0.0
        %836 = vmatpush2.xpose.msra.mxu0 0.0
        %837 = vmatprep.subr.mxu0 0.0
        %838 = vmatpush2.xpose.msra.mxu0 0.0
        %839 = vmatprep.subr.mxu0 0.0
        %840 = vmatpush2.xpose.msra.mxu0 0.0
        %841 = vmatprep.subr.mxu0 0.0
        %842 = vmatpush2.xpose.msra.mxu0 0.0
        %843 = vmatprep.mubr.f32.mxu0 0.0
        %844 = vmatmul.mubr.f32.gmra.mxu0 %v688
        %v845 = vpop.f32.mrf.mxu0
        %v846 = vadd.f32 0.0, %v845
        %v847 = vpop.f32.mrf.mxu0
        %848 = vdwg.mxu0
        %849 = vmatprep.subr.mxu0 0.0
        %850 = vmatpush1.xpose.msra.mxu0 0.0
        %851 = vmatprep.subr.mxu0 0.0
        %852 = vmatpush1.xpose.msra.mxu0 0.0
        %853 = vmatprep.subr.mxu0 0.0
        %854 = vmatpush1.xpose.msra.mxu0 0.0
        %855 = vmatprep.subr.mxu0 0.0
        %856 = vmatpush1.xpose.msra.mxu0 0.0
        %857 = vmatprep.subr.mxu0 0.0
        %858 = vmatpush1.xpose.msra.mxu0 0.0
        %859 = vmatprep.subr.mxu0 0.0
        %860 = vmatpush1.xpose.msra.mxu0 0.0
        %861 = vmatprep.subr.mxu0 0.0
        %862 = vmatpush1.xpose.msra.mxu0 0.0
        %863 = vmatprep.subr.mxu0 0.0
        %864 = vmatpush1.xpose.msra.mxu0 0.0
        %865 = vmatprep.subr.mxu0 0.0
        %866 = vmatpush1.xpose.msra.mxu0 0.0
        %867 = vmatprep.subr.mxu0 0.0
        %868 = vmatpush1.xpose.msra.mxu0 0.0
        %869 = vmatprep.subr.mxu0 0.0
        %870 = vmatpush1.xpose.msra.mxu0 0.0
        %871 = vmatprep.subr.mxu0 0.0
        %872 = vmatpush1.xpose.msra.mxu0 0.0
        %873 = vmatprep.subr.mxu0 0.0
        %874 = vmatpush1.xpose.msra.mxu0 0.0
        %875 = vmatprep.subr.mxu0 0.0
        %876 = vmatpush1.xpose.msra.mxu0 0.0
        %877 = vmatprep.subr.mxu0 0.0
        %878 = vmatpush1.xpose.msra.mxu0 0.0
        %879 = vmatprep.subr.mxu0 0.0
        %880 = vmatpush1.xpose.msra.mxu0 %v582
        %881 = vmatprep.subr.mxu0 0.0
        %882 = vmatpush2.xpose.msra.mxu0 0.0
        %883 = vmatprep.subr.mxu0 0.0
        %884 = vmatpush2.xpose.msra.mxu0 0.0
        %885 = vmatprep.subr.mxu0 0.0
        %886 = vmatpush2.xpose.msra.mxu0 0.0
        %887 = vmatprep.subr.mxu0 0.0
        %888 = vmatpush2.xpose.msra.mxu0 0.0
        %889 = vmatprep.subr.mxu0 0.0
        %890 = vmatpush2.xpose.msra.mxu0 0.0
        %891 = vmatprep.subr.mxu0 0.0
        %892 = vmatpush2.xpose.msra.mxu0 0.0
        %893 = vmatprep.subr.mxu0 0.0
        %894 = vmatpush2.xpose.msra.mxu0 0.0
        %895 = vmatprep.subr.mxu0 0.0
        %896 = vmatpush2.xpose.msra.mxu0 0.0
        %897 = vmatprep.subr.mxu0 0.0
        %898 = vmatpush2.xpose.msra.mxu0 0.0
        %899 = vmatprep.subr.mxu0 0.0
        %900 = vmatpush2.xpose.msra.mxu0 0.0
        %901 = vmatprep.subr.mxu0 0.0
        %902 = vmatpush2.xpose.msra.mxu0 0.0
        %903 = vmatprep.subr.mxu0 0.0
        %904 = vmatpush2.xpose.msra.mxu0 0.0
        %905 = vmatprep.subr.mxu0 0.0
        %906 = vmatpush2.xpose.msra.mxu0 0.0
        %907 = vmatprep.subr.mxu0 0.0
        %908 = vmatpush2.xpose.msra.mxu0 0.0
        %909 = vmatprep.subr.mxu0 0.0
        %910 = vmatpush2.xpose.msra.mxu0 0.0
        %911 = vmatprep.subr.mxu0 0.0
        %912 = vmatpush2.xpose.msra.mxu0 0.0
        %913 = vmatprep.mubr.f32.mxu0 0.0
        %914 = vmatmul.mubr.f32.gmra.mxu0 %v702
        %v915 = vpop.f32.mrf.mxu0
        %v916 = vadd.f32 0.0, %v915
        %v917 = vpop.f32.mrf.mxu0
        %918 = vdwg.mxu0
        %919 = vmatprep.subr.mxu0 0.0
        %920 = vmatpush1.xpose.msra.mxu0 0.0
        %921 = vmatprep.subr.mxu0 0.0
        %922 = vmatpush1.xpose.msra.mxu0 0.0
        %923 = vmatprep.subr.mxu0 0.0
        %924 = vmatpush1.xpose.msra.mxu0 0.0
        %925 = vmatprep.subr.mxu0 0.0
        %926 = vmatpush1.xpose.msra.mxu0 0.0
        %927 = vmatprep.subr.mxu0 0.0
        %928 = vmatpush1.xpose.msra.mxu0 0.0
        %929 = vmatprep.subr.mxu0 0.0
        %930 = vmatpush1.xpose.msra.mxu0 0.0
        %931 = vmatprep.subr.mxu0 0.0
        %932 = vmatpush1.xpose.msra.mxu0 0.0
        %933 = vmatprep.subr.mxu0 0.0
        %934 = vmatpush1.xpose.msra.mxu0 0.0
        %935 = vmatprep.subr.mxu0 0.0
        %936 = vmatpush1.xpose.msra.mxu0 0.0
        %937 = vmatprep.subr.mxu0 0.0
        %938 = vmatpush1.xpose.msra.mxu0 0.0
        %939 = vmatprep.subr.mxu0 0.0
        %940 = vmatpush1.xpose.msra.mxu0 0.0
        %941 = vmatprep.subr.mxu0 0.0
        %942 = vmatpush1.xpose.msra.mxu0 0.0
        %943 = vmatprep.subr.mxu0 0.0
        %944 = vmatpush1.xpose.msra.mxu0 0.0
        %945 = vmatprep.subr.mxu0 0.0
        %946 = vmatpush1.xpose.msra.mxu0 0.0
        %947 = vmatprep.subr.mxu0 0.0
        %948 = vmatpush1.xpose.msra.mxu0 0.0
        %949 = vmatprep.subr.mxu0 0.0
        %950 = vmatpush1.xpose.msra.mxu0 %v587
        %951 = vmatprep.subr.mxu0 0.0
        %952 = vmatpush2.xpose.msra.mxu0 0.0
        %953 = vmatprep.subr.mxu0 0.0
        %954 = vmatpush2.xpose.msra.mxu0 0.0
        %955 = vmatprep.subr.mxu0 0.0
        %956 = vmatpush2.xpose.msra.mxu0 0.0
        %957 = vmatprep.subr.mxu0 0.0
        %958 = vmatpush2.xpose.msra.mxu0 0.0
        %959 = vmatprep.subr.mxu0 0.0
        %960 = vmatpush2.xpose.msra.mxu0 0.0
        %961 = vmatprep.subr.mxu0 0.0
        %962 = vmatpush2.xpose.msra.mxu0 0.0
        %963 = vmatprep.subr.mxu0 0.0
        %964 = vmatpush2.xpose.msra.mxu0 0.0
        %965 = vmatprep.subr.mxu0 0.0
        %966 = vmatpush2.xpose.msra.mxu0 0.0
        %967 = vmatprep.subr.mxu0 0.0
        %968 = vmatpush2.xpose.msra.mxu0 0.0
        %969 = vmatprep.subr.mxu0 0.0
        %970 = vmatpush2.xpose.msra.mxu0 0.0
        %971 = vmatprep.subr.mxu0 0.0
        %972 = vmatpush2.xpose.msra.mxu0 0.0
        %973 = vmatprep.subr.mxu0 0.0
        %974 = vmatpush2.xpose.msra.mxu0 0.0
        %975 = vmatprep.subr.mxu0 0.0
        %976 = vmatpush2.xpose.msra.mxu0 0.0
        %977 = vmatprep.subr.mxu0 0.0
        %978 = vmatpush2.xpose.msra.mxu0 0.0
        %979 = vmatprep.subr.mxu0 0.0
        %980 = vmatpush2.xpose.msra.mxu0 0.0
        %981 = vmatprep.subr.mxu0 0.0
        %982 = vmatpush2.xpose.msra.mxu0 0.0
        %983 = vmatprep.mubr.f32.mxu0 0.0
        %984 = vmatmul.mubr.f32.gmra.mxu0 %v710
        %v985 = vpop.f32.mrf.mxu0
        %v986 = vadd.f32 0.0, %v985
        %v987 = vpop.f32.mrf.mxu0
        %988 = vdwg.mxu0
        %989 = vmatprep.subr.mxu0 0.0
        %990 = vmatpush1.xpose.msra.mxu0 0.0
        %991 = vmatprep.subr.mxu0 0.0
        %992 = vmatpush1.xpose.msra.mxu0 0.0
        %993 = vmatprep.subr.mxu0 0.0
        %994 = vmatpush1.xpose.msra.mxu0 0.0
        %995 = vmatprep.subr.mxu0 0.0
        %996 = vmatpush1.xpose.msra.mxu0 0.0
        %997 = vmatprep.subr.mxu0 0.0
        %998 = vmatpush1.xpose.msra.mxu0 0.0
        %999 = vmatprep.subr.mxu0 0.0
        %1000 = vmatpush1.xpose.msra.mxu0 0.0
        %1001 = vmatprep.subr.mxu0 0.0
        %1002 = vmatpush1.xpose.msra.mxu0 0.0
        %1003 = vmatprep.subr.mxu0 0.0
        %1004 = vmatpush1.xpose.msra.mxu0 0.0
        %1005 = vmatprep.subr.mxu0 0.0
        %1006 = vmatpush1.xpose.msra.mxu0 0.0
        %1007 = vmatprep.subr.mxu0 0.0
        %1008 = vmatpush1.xpose.msra.mxu0 0.0
        %1009 = vmatprep.subr.mxu0 0.0
        %1010 = vmatpush1.xpose.msra.mxu0 0.0
        %1011 = vmatprep.subr.mxu0 0.0
        %1012 = vmatpush1.xpose.msra.mxu0 0.0
        %1013 = vmatprep.subr.mxu0 0.0
        %1014 = vmatpush1.xpose.msra.mxu0 0.0
        %1015 = vmatprep.subr.mxu0 0.0
        %1016 = vmatpush1.xpose.msra.mxu0 0.0
        %1017 = vmatprep.subr.mxu0 0.0
        %1018 = vmatpush1.xpose.msra.mxu0 0.0
        %1019 = vmatprep.subr.mxu0 0.0
        %1020 = vmatpush1.xpose.msra.mxu0 %v592
        %1021 = vmatprep.subr.mxu0 0.0
        %1022 = vmatpush2.xpose.msra.mxu0 0.0
        %1023 = vmatprep.subr.mxu0 0.0
        %1024 = vmatpush2.xpose.msra.mxu0 0.0
        %1025 = vmatprep.subr.mxu0 0.0
        %1026 = vmatpush2.xpose.msra.mxu0 0.0
        %1027 = vmatprep.subr.mxu0 0.0
        %1028 = vmatpush2.xpose.msra.mxu0 0.0
        %1029 = vmatprep.subr.mxu0 0.0
        %1030 = vmatpush2.xpose.msra.mxu0 0.0
        %1031 = vmatprep.subr.mxu0 0.0
        %1032 = vmatpush2.xpose.msra.mxu0 0.0
        %1033 = vmatprep.subr.mxu0 0.0
        %1034 = vmatpush2.xpose.msra.mxu0 0.0
        %1035 = vmatprep.subr.mxu0 0.0
        %1036 = vmatpush2.xpose.msra.mxu0 0.0
        %1037 = vmatprep.subr.mxu0 0.0
        %1038 = vmatpush2.xpose.msra.mxu0 0.0
        %1039 = vmatprep.subr.mxu0 0.0
        %1040 = vmatpush2.xpose.msra.mxu0 0.0
        %1041 = vmatprep.subr.mxu0 0.0
        %1042 = vmatpush2.xpose.msra.mxu0 0.0
        %1043 = vmatprep.subr.mxu0 0.0
        %1044 = vmatpush2.xpose.msra.mxu0 0.0
        %1045 = vmatprep.subr.mxu0 0.0
        %1046 = vmatpush2.xpose.msra.mxu0 0.0
        %1047 = vmatprep.subr.mxu0 0.0
        %1048 = vmatpush2.xpose.msra.mxu0 0.0
        %1049 = vmatprep.subr.mxu0 0.0
        %1050 = vmatpush2.xpose.msra.mxu0 0.0
        %1051 = vmatprep.subr.mxu0 0.0
        %1052 = vmatpush2.xpose.msra.mxu0 0.0
        %1053 = vmatprep.mubr.f32.mxu0 0.0
        %1054 = vmatmul.mubr.f32.gmra.mxu0 %v712
        %v1055 = vpop.f32.mrf.mxu0
        %v1056 = vadd.f32 0.0, %v1055
        %v1057 = vpop.f32.mrf.mxu0
        %1058 = vdwg.mxu0
        %1059 = vmatprep.subr.mxu0 0.0
        %1060 = vmatpush1.xpose.msra.mxu0 0.0
        %1061 = vmatprep.subr.mxu0 0.0
        %1062 = vmatpush1.xpose.msra.mxu0 0.0
        %1063 = vmatprep.subr.mxu0 0.0
        %1064 = vmatpush1.xpose.msra.mxu0 0.0
        %1065 = vmatprep.subr.mxu0 0.0
        %1066 = vmatpush1.xpose.msra.mxu0 0.0
        %1067 = vmatprep.subr.mxu0 0.0
        %1068 = vmatpush1.xpose.msra.mxu0 0.0
        %1069 = vmatprep.subr.mxu0 0.0
        %1070 = vmatpush1.xpose.msra.mxu0 0.0
        %1071 = vmatprep.subr.mxu0 0.0
        %1072 = vmatpush1.xpose.msra.mxu0 0.0
        %1073 = vmatprep.subr.mxu0 0.0
        %1074 = vmatpush1.xpose.msra.mxu0 0.0
        %1075 = vmatprep.subr.mxu0 0.0
        %1076 = vmatpush1.xpose.msra.mxu0 0.0
        %1077 = vmatprep.subr.mxu0 0.0
        %1078 = vmatpush1.xpose.msra.mxu0 0.0
        %1079 = vmatprep.subr.mxu0 0.0
        %1080 = vmatpush1.xpose.msra.mxu0 0.0
        %1081 = vmatprep.subr.mxu0 0.0
        %1082 = vmatpush1.xpose.msra.mxu0 0.0
        %1083 = vmatprep.subr.mxu0 0.0
        %1084 = vmatpush1.xpose.msra.mxu0 0.0
        %1085 = vmatprep.subr.mxu0 0.0
        %1086 = vmatpush1.xpose.msra.mxu0 0.0
        %1087 = vmatprep.subr.mxu0 0.0
        %1088 = vmatpush1.xpose.msra.mxu0 0.0
        %1089 = vmatprep.subr.mxu0 0.0
        %1090 = vmatpush1.xpose.msra.mxu0 %v597
        %1091 = vmatprep.subr.mxu0 0.0
        %1092 = vmatpush2.xpose.msra.mxu0 0.0
        %1093 = vmatprep.subr.mxu0 0.0
        %1094 = vmatpush2.xpose.msra.mxu0 0.0
        %1095 = vmatprep.subr.mxu0 0.0
        %1096 = vmatpush2.xpose.msra.mxu0 0.0
        %1097 = vmatprep.subr.mxu0 0.0
        %1098 = vmatpush2.xpose.msra.mxu0 0.0
        %1099 = vmatprep.subr.mxu0 0.0
        %1100 = vmatpush2.xpose.msra.mxu0 0.0
        %1101 = vmatprep.subr.mxu0 0.0
        %1102 = vmatpush2.xpose.msra.mxu0 0.0
        %1103 = vmatprep.subr.mxu0 0.0
        %1104 = vmatpush2.xpose.msra.mxu0 0.0
        %1105 = vmatprep.subr.mxu0 0.0
        %1106 = vmatpush2.xpose.msra.mxu0 0.0
        %1107 = vmatprep.subr.mxu0 0.0
        %1108 = vmatpush2.xpose.msra.mxu0 0.0
        %1109 = vmatprep.subr.mxu0 0.0
        %1110 = vmatpush2.xpose.msra.mxu0 0.0
        %1111 = vmatprep.subr.mxu0 0.0
        %1112 = vmatpush2.xpose.msra.mxu0 0.0
        %1113 = vmatprep.subr.mxu0 0.0
        %1114 = vmatpush2.xpose.msra.mxu0 0.0
        %1115 = vmatprep.subr.mxu0 0.0
        %1116 = vmatpush2.xpose.msra.mxu0 0.0
        %1117 = vmatprep.subr.mxu0 0.0
        %1118 = vmatpush2.xpose.msra.mxu0 0.0
        %1119 = vmatprep.subr.mxu0 0.0
        %1120 = vmatpush2.xpose.msra.mxu0 0.0
        %1121 = vmatprep.subr.mxu0 0.0
        %1122 = vmatpush2.xpose.msra.mxu0 0.0
        %1123 = vmatprep.mubr.f32.mxu0 0.0
        %1124 = vmatmul.mubr.f32.gmra.mxu0 %v695
        %v1125 = vpop.f32.mrf.mxu0
        %v1126 = vadd.f32 0.0, %v1125
        %v1127 = vpop.f32.mrf.mxu0
        %1128 = vdwg.mxu0
        %1129 = vmatprep.subr.mxu0 0.0
        %1130 = vmatpush1.xpose.msra.mxu0 0.0
        %1131 = vmatprep.subr.mxu0 0.0
        %1132 = vmatpush1.xpose.msra.mxu0 0.0
        %1133 = vmatprep.subr.mxu0 0.0
        %1134 = vmatpush1.xpose.msra.mxu0 0.0
        %1135 = vmatprep.subr.mxu0 0.0
        %1136 = vmatpush1.xpose.msra.mxu0 0.0
        %1137 = vmatprep.subr.mxu0 0.0
        %1138 = vmatpush1.xpose.msra.mxu0 0.0
        %1139 = vmatprep.subr.mxu0 0.0
        %1140 = vmatpush1.xpose.msra.mxu0 0.0
        %1141 = vmatprep.subr.mxu0 0.0
        %1142 = vmatpush1.xpose.msra.mxu0 0.0
        %1143 = vmatprep.subr.mxu0 0.0
        %1144 = vmatpush1.xpose.msra.mxu0 0.0
        %1145 = vmatprep.subr.mxu0 0.0
        %1146 = vmatpush1.xpose.msra.mxu0 0.0
        %1147 = vmatprep.subr.mxu0 0.0
        %1148 = vmatpush1.xpose.msra.mxu0 0.0
        %1149 = vmatprep.subr.mxu0 0.0
        %1150 = vmatpush1.xpose.msra.mxu0 0.0
        %1151 = vmatprep.subr.mxu0 0.0
        %1152 = vmatpush1.xpose.msra.mxu0 0.0
        %1153 = vmatprep.subr.mxu0 0.0
        %1154 = vmatpush1.xpose.msra.mxu0 0.0
        %1155 = vmatprep.subr.mxu0 0.0
        %1156 = vmatpush1.xpose.msra.mxu0 0.0
        %1157 = vmatprep.subr.mxu0 0.0
        %1158 = vmatpush1.xpose.msra.mxu0 0.0
        %1159 = vmatprep.subr.mxu0 0.0
        %1160 = vmatpush1.xpose.msra.mxu0 %v602
        %1161 = vmatprep.subr.mxu0 0.0
        %1162 = vmatpush2.xpose.msra.mxu0 0.0
        %1163 = vmatprep.subr.mxu0 0.0
        %1164 = vmatpush2.xpose.msra.mxu0 0.0
        %1165 = vmatprep.subr.mxu0 0.0
        %1166 = vmatpush2.xpose.msra.mxu0 0.0
        %1167 = vmatprep.subr.mxu0 0.0
        %1168 = vmatpush2.xpose.msra.mxu0 0.0
        %1169 = vmatprep.subr.mxu0 0.0
        %1170 = vmatpush2.xpose.msra.mxu0 0.0
        %1171 = vmatprep.subr.mxu0 0.0
        %1172 = vmatpush2.xpose.msra.mxu0 0.0
        %1173 = vmatprep.subr.mxu0 0.0
        %1174 = vmatpush2.xpose.msra.mxu0 0.0
        %1175 = vmatprep.subr.mxu0 0.0
        %1176 = vmatpush2.xpose.msra.mxu0 0.0
        %1177 = vmatprep.subr.mxu0 0.0
        %1178 = vmatpush2.xpose.msra.mxu0 0.0
        %1179 = vmatprep.subr.mxu0 0.0
        %1180 = vmatpush2.xpose.msra.mxu0 0.0
        %1181 = vmatprep.subr.mxu0 0.0
        %1182 = vmatpush2.xpose.msra.mxu0 0.0
        %1183 = vmatprep.subr.mxu0 0.0
        %1184 = vmatpush2.xpose.msra.mxu0 0.0
        %1185 = vmatprep.subr.mxu0 0.0
        %1186 = vmatpush2.xpose.msra.mxu0 0.0
        %1187 = vmatprep.subr.mxu0 0.0
        %1188 = vmatpush2.xpose.msra.mxu0 0.0
        %1189 = vmatprep.subr.mxu0 0.0
        %1190 = vmatpush2.xpose.msra.mxu0 0.0
        %1191 = vmatprep.subr.mxu0 0.0
        %1192 = vmatpush2.xpose.msra.mxu0 0.0
        %1193 = vmatprep.mubr.f32.mxu0 0.0
        %1194 = vmatmul.mubr.f32.gmra.mxu0 %v709
        %v1195 = vpop.f32.mrf.mxu0
        %v1196 = vadd.f32 0.0, %v1195
        %v1197 = vpop.f32.mrf.mxu0
        %1198 = vdwg.mxu0
        %1199 = vmatprep.subr.mxu0 0.0
        %1200 = vmatpush1.xpose.msra.mxu0 0.0
        %1201 = vmatprep.subr.mxu0 0.0
        %1202 = vmatpush1.xpose.msra.mxu0 0.0
        %1203 = vmatprep.subr.mxu0 0.0
        %1204 = vmatpush1.xpose.msra.mxu0 0.0
        %1205 = vmatprep.subr.mxu0 0.0
        %1206 = vmatpush1.xpose.msra.mxu0 0.0
        %1207 = vmatprep.subr.mxu0 0.0
        %1208 = vmatpush1.xpose.msra.mxu0 0.0
        %1209 = vmatprep.subr.mxu0 0.0
        %1210 = vmatpush1.xpose.msra.mxu0 0.0
        %1211 = vmatprep.subr.mxu0 0.0
        %1212 = vmatpush1.xpose.msra.mxu0 0.0
        %1213 = vmatprep.subr.mxu0 0.0
        %1214 = vmatpush1.xpose.msra.mxu0 0.0
        %1215 = vmatprep.subr.mxu0 0.0
        %1216 = vmatpush1.xpose.msra.mxu0 0.0
        %1217 = vmatprep.subr.mxu0 0.0
        %1218 = vmatpush1.xpose.msra.mxu0 0.0
        %1219 = vmatprep.subr.mxu0 0.0
        %1220 = vmatpush1.xpose.msra.mxu0 0.0
        %1221 = vmatprep.subr.mxu0 0.0
        %1222 = vmatpush1.xpose.msra.mxu0 0.0
        %1223 = vmatprep.subr.mxu0 0.0
        %1224 = vmatpush1.xpose.msra.mxu0 0.0
        %1225 = vmatprep.subr.mxu0 0.0
        %1226 = vmatpush1.xpose.msra.mxu0 0.0
        %1227 = vmatprep.subr.mxu0 0.0
        %1228 = vmatpush1.xpose.msra.mxu0 0.0
        %1229 = vmatprep.subr.mxu0 0.0
        %1230 = vmatpush1.xpose.msra.mxu0 %v607
        %1231 = vmatprep.subr.mxu0 0.0
        %1232 = vmatpush2.xpose.msra.mxu0 0.0
        %1233 = vmatprep.subr.mxu0 0.0
        %1234 = vmatpush2.xpose.msra.mxu0 0.0
        %1235 = vmatprep.subr.mxu0 0.0
        %1236 = vmatpush2.xpose.msra.mxu0 0.0
        %1237 = vmatprep.subr.mxu0 0.0
        %1238 = vmatpush2.xpose.msra.mxu0 0.0
        %1239 = vmatprep.subr.mxu0 0.0
        %1240 = vmatpush2.xpose.msra.mxu0 0.0
        %1241 = vmatprep.subr.mxu0 0.0
        %1242 = vmatpush2.xpose.msra.mxu0 0.0
        %1243 = vmatprep.subr.mxu0 0.0
        %1244 = vmatpush2.xpose.msra.mxu0 0.0
        %1245 = vmatprep.subr.mxu0 0.0
        %1246 = vmatpush2.xpose.msra.mxu0 0.0
        %1247 = vmatprep.subr.mxu0 0.0
        %1248 = vmatpush2.xpose.msra.mxu0 0.0
        %1249 = vmatprep.subr.mxu0 0.0
        %1250 = vmatpush2.xpose.msra.mxu0 0.0
        %1251 = vmatprep.subr.mxu0 0.0
        %1252 = vmatpush2.xpose.msra.mxu0 0.0
        %1253 = vmatprep.subr.mxu0 0.0
        %1254 = vmatpush2.xpose.msra.mxu0 0.0
        %1255 = vmatprep.subr.mxu0 0.0
        %1256 = vmatpush2.xpose.msra.mxu0 0.0
        %1257 = vmatprep.subr.mxu0 0.0
        %1258 = vmatpush2.xpose.msra.mxu0 0.0
        %1259 = vmatprep.subr.mxu0 0.0
        %1260 = vmatpush2.xpose.msra.mxu0 0.0
        %1261 = vmatprep.subr.mxu0 0.0
        %1262 = vmatpush2.xpose.msra.mxu0 0.0
        %1263 = vmatprep.mubr.f32.mxu0 0.0
        %1264 = vmatmul.mubr.f32.gmra.mxu0 %v711
        %v1265 = vpop.f32.mrf.mxu0
        %v1266 = vadd.f32 0.0, %v1265
        %v1267 = vpop.f32.mrf.mxu0
        %1268 = vdwg.mxu0
        %1269 = vmatprep.subr.mxu0 0.0
        %1270 = vmatpush1.xpose.msra.mxu0 0.0
        %1271 = vmatprep.subr.mxu0 0.0
        %1272 = vmatpush1.xpose.msra.mxu0 0.0
        %1273 = vmatprep.subr.mxu0 0.0
        %1274 = vmatpush1.xpose.msra.mxu0 0.0
        %1275 = vmatprep.subr.mxu0 0.0
        %1276 = vmatpush1.xpose.msra.mxu0 0.0
        %1277 = vmatprep.subr.mxu0 0.0
        %1278 = vmatpush1.xpose.msra.mxu0 0.0
        %1279 = vmatprep.subr.mxu0 0.0
        %1280 = vmatpush1.xpose.msra.mxu0 0.0
        %1281 = vmatprep.subr.mxu0 0.0
        %1282 = vmatpush1.xpose.msra.mxu0 0.0
        %1283 = vmatprep.subr.mxu0 0.0
        %1284 = vmatpush1.xpose.msra.mxu0 0.0
        %1285 = vmatprep.subr.mxu0 0.0
        %1286 = vmatpush1.xpose.msra.mxu0 0.0
        %1287 = vmatprep.subr.mxu0 0.0
        %1288 = vmatpush1.xpose.msra.mxu0 0.0
        %1289 = vmatprep.subr.mxu0 0.0
        %1290 = vmatpush1.xpose.msra.mxu0 0.0
        %1291 = vmatprep.subr.mxu0 0.0
        %1292 = vmatpush1.xpose.msra.mxu0 0.0
        %1293 = vmatprep.subr.mxu0 0.0
        %1294 = vmatpush1.xpose.msra.mxu0 0.0
        %1295 = vmatprep.subr.mxu0 0.0
        %1296 = vmatpush1.xpose.msra.mxu0 0.0
        %1297 = vmatprep.subr.mxu0 0.0
        %1298 = vmatpush1.xpose.msra.mxu0 0.0
        %1299 = vmatprep.subr.mxu0 0.0
        %1300 = vmatpush1.xpose.msra.mxu0 %v612
        %1301 = vmatprep.subr.mxu0 0.0
        %1302 = vmatpush2.xpose.msra.mxu0 0.0
        %1303 = vmatprep.subr.mxu0 0.0
        %1304 = vmatpush2.xpose.msra.mxu0 0.0
        %1305 = vmatprep.subr.mxu0 0.0
        %1306 = vmatpush2.xpose.msra.mxu0 0.0
        %1307 = vmatprep.subr.mxu0 0.0
        %1308 = vmatpush2.xpose.msra.mxu0 0.0
        %1309 = vmatprep.subr.mxu0 0.0
        %1310 = vmatpush2.xpose.msra.mxu0 0.0
        %1311 = vmatprep.subr.mxu0 0.0
        %1312 = vmatpush2.xpose.msra.mxu0 0.0
        %1313 = vmatprep.subr.mxu0 0.0
        %1314 = vmatpush2.xpose.msra.mxu0 0.0
        %1315 = vmatprep.subr.mxu0 0.0
        %1316 = vmatpush2.xpose.msra.mxu0 0.0
        %1317 = vmatprep.subr.mxu0 0.0
        %1318 = vmatpush2.xpose.msra.mxu0 0.0
        %1319 = vmatprep.subr.mxu0 0.0
        %1320 = vmatpush2.xpose.msra.mxu0 0.0
        %1321 = vmatprep.subr.mxu0 0.0
        %1322 = vmatpush2.xpose.msra.mxu0 0.0
        %1323 = vmatprep.subr.mxu0 0.0
        %1324 = vmatpush2.xpose.msra.mxu0 0.0
        %1325 = vmatprep.subr.mxu0 0.0
        %1326 = vmatpush2.xpose.msra.mxu0 0.0
        %1327 = vmatprep.subr.mxu0 0.0
        %1328 = vmatpush2.xpose.msra.mxu0 0.0
        %1329 = vmatprep.subr.mxu0 0.0
        %1330 = vmatpush2.xpose.msra.mxu0 0.0
        %1331 = vmatprep.subr.mxu0 0.0
        %1332 = vmatpush2.xpose.msra.mxu0 0.0
        %1333 = vmatprep.mubr.f32.mxu0 0.0
        %1334 = vmatmul.mubr.f32.gmra.mxu0 %v713
        %v1335 = vpop.f32.mrf.mxu0
        %v1336 = vadd.f32 0.0, %v1335
        %v1337 = vpop.f32.mrf.mxu0
        %1338 = vdwg.mxu0
        %1339 = vmatprep.subr.mxu0 0.0
        %1340 = vmatpush1.xpose.msra.mxu0 0.0
        %1341 = vmatprep.subr.mxu0 0.0
        %1342 = vmatpush1.xpose.msra.mxu0 0.0
        %1343 = vmatprep.subr.mxu0 0.0
        %1344 = vmatpush1.xpose.msra.mxu0 0.0
        %1345 = vmatprep.subr.mxu0 0.0
        %1346 = vmatpush1.xpose.msra.mxu0 0.0
        %1347 = vmatprep.subr.mxu0 0.0
        %1348 = vmatpush1.xpose.msra.mxu0 0.0
        %1349 = vmatprep.subr.mxu0 0.0
        %1350 = vmatpush1.xpose.msra.mxu0 0.0
        %1351 = vmatprep.subr.mxu0 0.0
        %1352 = vmatpush1.xpose.msra.mxu0 0.0
        %1353 = vmatprep.subr.mxu0 0.0
        %1354 = vmatpush1.xpose.msra.mxu0 0.0
        %1355 = vmatprep.subr.mxu0 0.0
        %1356 = vmatpush1.xpose.msra.mxu0 0.0
        %1357 = vmatprep.subr.mxu0 0.0
        %1358 = vmatpush1.xpose.msra.mxu0 0.0
        %1359 = vmatprep.subr.mxu0 0.0
        %1360 = vmatpush1.xpose.msra.mxu0 0.0
        %1361 = vmatprep.subr.mxu0 0.0
        %1362 = vmatpush1.xpose.msra.mxu0 0.0
        %1363 = vmatprep.subr.mxu0 0.0
        %1364 = vmatpush1.xpose.msra.mxu0 0.0
        %1365 = vmatprep.subr.mxu0 0.0
        %1366 = vmatpush1.xpose.msra.mxu0 0.0
        %1367 = vmatprep.subr.mxu0 0.0
        %1368 = vmatpush1.xpose.msra.mxu0 0.0
        %1369 = vmatprep.subr.mxu0 0.0
        %1370 = vmatpush1.xpose.msra.mxu0 %v617
        %1371 = vmatprep.subr.mxu0 0.0
        %1372 = vmatpush2.xpose.msra.mxu0 0.0
        %1373 = vmatprep.subr.mxu0 0.0
        %1374 = vmatpush2.xpose.msra.mxu0 0.0
        %1375 = vmatprep.subr.mxu0 0.0
        %1376 = vmatpush2.xpose.msra.mxu0 0.0
        %1377 = vmatprep.subr.mxu0 0.0
        %1378 = vmatpush2.xpose.msra.mxu0 0.0
        %1379 = vmatprep.subr.mxu0 0.0
        %1380 = vmatpush2.xpose.msra.mxu0 0.0
        %1381 = vmatprep.subr.mxu0 0.0
        %1382 = vmatpush2.xpose.msra.mxu0 0.0
        %1383 = vmatprep.subr.mxu0 0.0
        %1384 = vmatpush2.xpose.msra.mxu0 0.0
        %1385 = vmatprep.subr.mxu0 0.0
        %1386 = vmatpush2.xpose.msra.mxu0 0.0
        %1387 = vmatprep.subr.mxu0 0.0
        %1388 = vmatpush2.xpose.msra.mxu0 0.0
        %1389 = vmatprep.subr.mxu0 0.0
        %1390 = vmatpush2.xpose.msra.mxu0 0.0
        %1391 = vmatprep.subr.mxu0 0.0
        %1392 = vmatpush2.xpose.msra.mxu0 0.0
        %1393 = vmatprep.subr.mxu0 0.0
        %1394 = vmatpush2.xpose.msra.mxu0 0.0
        %1395 = vmatprep.subr.mxu0 0.0
        %1396 = vmatpush2.xpose.msra.mxu0 0.0
        %1397 = vmatprep.subr.mxu0 0.0
        %1398 = vmatpush2.xpose.msra.mxu0 0.0
        %1399 = vmatprep.subr.mxu0 0.0
        %1400 = vmatpush2.xpose.msra.mxu0 0.0
        %1401 = vmatprep.subr.mxu0 0.0
        %1402 = vmatpush2.xpose.msra.mxu0 0.0
        %1403 = vmatprep.mubr.f32.mxu0 0.0
        %1404 = vmatmul.mubr.f32.gmra.mxu0 %v737
        %v1405 = vpop.f32.mrf.mxu0
        %v1406 = vadd.f32 0.0, %v1405
        %v1407 = vpop.f32.mrf.mxu0
        %1408 = vdwg.mxu0
        %1409 = vmatprep.subr.mxu0 0.0
        %1410 = vmatpush1.xpose.msra.mxu0 0.0
        %1411 = vmatprep.subr.mxu0 0.0
        %1412 = vmatpush1.xpose.msra.mxu0 0.0
        %1413 = vmatprep.subr.mxu0 0.0
        %1414 = vmatpush1.xpose.msra.mxu0 0.0
        %1415 = vmatprep.subr.mxu0 0.0
        %1416 = vmatpush1.xpose.msra.mxu0 0.0
        %1417 = vmatprep.subr.mxu0 0.0
        %1418 = vmatpush1.xpose.msra.mxu0 0.0
        %1419 = vmatprep.subr.mxu0 0.0
        %1420 = vmatpush1.xpose.msra.mxu0 0.0
        %1421 = vmatprep.subr.mxu0 0.0
        %1422 = vmatpush1.xpose.msra.mxu0 0.0
        %1423 = vmatprep.subr.mxu0 0.0
        %1424 = vmatpush1.xpose.msra.mxu0 0.0
        %1425 = vmatprep.subr.mxu0 0.0
        %1426 = vmatpush1.xpose.msra.mxu0 0.0
        %1427 = vmatprep.subr.mxu0 0.0
        %1428 = vmatpush1.xpose.msra.mxu0 0.0
        %1429 = vmatprep.subr.mxu0 0.0
        %1430 = vmatpush1.xpose.msra.mxu0 0.0
        %1431 = vmatprep.subr.mxu0 0.0
        %1432 = vmatpush1.xpose.msra.mxu0 0.0
        %1433 = vmatprep.subr.mxu0 0.0
        %1434 = vmatpush1.xpose.msra.mxu0 0.0
        %1435 = vmatprep.subr.mxu0 0.0
        %1436 = vmatpush1.xpose.msra.mxu0 0.0
        %1437 = vmatprep.subr.mxu0 0.0
        %1438 = vmatpush1.xpose.msra.mxu0 0.0
        %1439 = vmatprep.subr.mxu0 0.0
        %1440 = vmatpush1.xpose.msra.mxu0 %v622
        %1441 = vmatprep.subr.mxu0 0.0
        %1442 = vmatpush2.xpose.msra.mxu0 0.0
        %1443 = vmatprep.subr.mxu0 0.0
        %1444 = vmatpush2.xpose.msra.mxu0 0.0
        %1445 = vmatprep.subr.mxu0 0.0
        %1446 = vmatpush2.xpose.msra.mxu0 0.0
        %1447 = vmatprep.subr.mxu0 0.0
        %1448 = vmatpush2.xpose.msra.mxu0 0.0
        %1449 = vmatprep.subr.mxu0 0.0
        %1450 = vmatpush2.xpose.msra.mxu0 0.0
        %1451 = vmatprep.subr.mxu0 0.0
        %1452 = vmatpush2.xpose.msra.mxu0 0.0
        %1453 = vmatprep.subr.mxu0 0.0
        %1454 = vmatpush2.xpose.msra.mxu0 0.0
        %1455 = vmatprep.subr.mxu0 0.0
        %1456 = vmatpush2.xpose.msra.mxu0 0.0
        %1457 = vmatprep.subr.mxu0 0.0
        %1458 = vmatpush2.xpose.msra.mxu0 0.0
        %1459 = vmatprep.subr.mxu0 0.0
        %1460 = vmatpush2.xpose.msra.mxu0 0.0
        %1461 = vmatprep.subr.mxu0 0.0
        %1462 = vmatpush2.xpose.msra.mxu0 0.0
        %1463 = vmatprep.subr.mxu0 0.0
        %1464 = vmatpush2.xpose.msra.mxu0 0.0
        %1465 = vmatprep.subr.mxu0 0.0
        %1466 = vmatpush2.xpose.msra.mxu0 0.0
        %1467 = vmatprep.subr.mxu0 0.0
        %1468 = vmatpush2.xpose.msra.mxu0 0.0
        %1469 = vmatprep.subr.mxu0 0.0
        %1470 = vmatpush2.xpose.msra.mxu0 0.0
        %1471 = vmatprep.subr.mxu0 0.0
        %1472 = vmatpush2.xpose.msra.mxu0 0.0
        %1473 = vmatprep.mubr.f32.mxu0 0.0
        %1474 = vmatmul.mubr.f32.gmra.mxu0 %v751
        %v1475 = vpop.f32.mrf.mxu0
        %v1476 = vadd.f32 0.0, %v1475
        %v1477 = vpop.f32.mrf.mxu0
        %1478 = vdwg.mxu0
        %1479 = vmatprep.subr.mxu0 0.0
        %1480 = vmatpush1.xpose.msra.mxu0 0.0
        %1481 = vmatprep.subr.mxu0 0.0
        %1482 = vmatpush1.xpose.msra.mxu0 0.0
        %1483 = vmatprep.subr.mxu0 0.0
        %1484 = vmatpush1.xpose.msra.mxu0 0.0
        %1485 = vmatprep.subr.mxu0 0.0
        %1486 = vmatpush1.xpose.msra.mxu0 0.0
        %1487 = vmatprep.subr.mxu0 0.0
        %1488 = vmatpush1.xpose.msra.mxu0 0.0
        %1489 = vmatprep.subr.mxu0 0.0
        %1490 = vmatpush1.xpose.msra.mxu0 0.0
        %1491 = vmatprep.subr.mxu0 0.0
        %1492 = vmatpush1.xpose.msra.mxu0 0.0
        %1493 = vmatprep.subr.mxu0 0.0
        %1494 = vmatpush1.xpose.msra.mxu0 0.0
        %1495 = vmatprep.subr.mxu0 0.0
        %1496 = vmatpush1.xpose.msra.mxu0 0.0
        %1497 = vmatprep.subr.mxu0 0.0
        %1498 = vmatpush1.xpose.msra.mxu0 0.0
        %1499 = vmatprep.subr.mxu0 0.0
        %1500 = vmatpush1.xpose.msra.mxu0 0.0
        %1501 = vmatprep.subr.mxu0 0.0
        %1502 = vmatpush1.xpose.msra.mxu0 0.0
        %1503 = vmatprep.subr.mxu0 0.0
        %1504 = vmatpush1.xpose.msra.mxu0 0.0
        %1505 = vmatprep.subr.mxu0 0.0
        %1506 = vmatpush1.xpose.msra.mxu0 0.0
        %1507 = vmatprep.subr.mxu0 0.0
        %1508 = vmatpush1.xpose.msra.mxu0 0.0
        %1509 = vmatprep.subr.mxu0 0.0
        %1510 = vmatpush1.xpose.msra.mxu0 %v627
        %1511 = vmatprep.subr.mxu0 0.0
        %1512 = vmatpush2.xpose.msra.mxu0 0.0
        %1513 = vmatprep.subr.mxu0 0.0
        %1514 = vmatpush2.xpose.msra.mxu0 0.0
        %1515 = vmatprep.subr.mxu0 0.0
        %1516 = vmatpush2.xpose.msra.mxu0 0.0
        %1517 = vmatprep.subr.mxu0 0.0
        %1518 = vmatpush2.xpose.msra.mxu0 0.0
        %1519 = vmatprep.subr.mxu0 0.0
        %1520 = vmatpush2.xpose.msra.mxu0 0.0
        %1521 = vmatprep.subr.mxu0 0.0
        %1522 = vmatpush2.xpose.msra.mxu0 0.0
        %1523 = vmatprep.subr.mxu0 0.0
        %1524 = vmatpush2.xpose.msra.mxu0 0.0
        %1525 = vmatprep.subr.mxu0 0.0
        %1526 = vmatpush2.xpose.msra.mxu0 0.0
        %1527 = vmatprep.subr.mxu0 0.0
        %1528 = vmatpush2.xpose.msra.mxu0 0.0
        %1529 = vmatprep.subr.mxu0 0.0
        %1530 = vmatpush2.xpose.msra.mxu0 0.0
        %1531 = vmatprep.subr.mxu0 0.0
        %1532 = vmatpush2.xpose.msra.mxu0 0.0
        %1533 = vmatprep.subr.mxu0 0.0
        %1534 = vmatpush2.xpose.msra.mxu0 0.0
        %1535 = vmatprep.subr.mxu0 0.0
        %1536 = vmatpush2.xpose.msra.mxu0 0.0
        %1537 = vmatprep.subr.mxu0 0.0
        %1538 = vmatpush2.xpose.msra.mxu0 0.0
        %1539 = vmatprep.subr.mxu0 0.0
        %1540 = vmatpush2.xpose.msra.mxu0 0.0
        %1541 = vmatprep.subr.mxu0 0.0
        %1542 = vmatpush2.xpose.msra.mxu0 0.0
        %1543 = vmatprep.mubr.f32.mxu0 0.0
        %1544 = vmatmul.mubr.f32.gmra.mxu0 %v759
        %v1545 = vpop.f32.mrf.mxu0
        %v1546 = vadd.f32 0.0, %v1545
        %v1547 = vpop.f32.mrf.mxu0
        %1548 = vdwg.mxu0
        %1549 = vmatprep.subr.mxu0 0.0
        %1550 = vmatpush1.xpose.msra.mxu0 0.0
        %1551 = vmatprep.subr.mxu0 0.0
        %1552 = vmatpush1.xpose.msra.mxu0 0.0
        %1553 = vmatprep.subr.mxu0 0.0
        %1554 = vmatpush1.xpose.msra.mxu0 0.0
        %1555 = vmatprep.subr.mxu0 0.0
        %1556 = vmatpush1.xpose.msra.mxu0 0.0
        %1557 = vmatprep.subr.mxu0 0.0
        %1558 = vmatpush1.xpose.msra.mxu0 0.0
        %1559 = vmatprep.subr.mxu0 0.0
        %1560 = vmatpush1.xpose.msra.mxu0 0.0
        %1561 = vmatprep.subr.mxu0 0.0
        %1562 = vmatpush1.xpose.msra.mxu0 0.0
        %1563 = vmatprep.subr.mxu0 0.0
        %1564 = vmatpush1.xpose.msra.mxu0 0.0
        %1565 = vmatprep.subr.mxu0 0.0
        %1566 = vmatpush1.xpose.msra.mxu0 0.0
        %1567 = vmatprep.subr.mxu0 0.0
        %1568 = vmatpush1.xpose.msra.mxu0 0.0
        %1569 = vmatprep.subr.mxu0 0.0
        %1570 = vmatpush1.xpose.msra.mxu0 0.0
        %1571 = vmatprep.subr.mxu0 0.0
        %1572 = vmatpush1.xpose.msra.mxu0 0.0
        %1573 = vmatprep.subr.mxu0 0.0
        %1574 = vmatpush1.xpose.msra.mxu0 0.0
        %1575 = vmatprep.subr.mxu0 0.0
        %1576 = vmatpush1.xpose.msra.mxu0 0.0
        %1577 = vmatprep.subr.mxu0 0.0
        %1578 = vmatpush1.xpose.msra.mxu0 0.0
        %1579 = vmatprep.subr.mxu0 0.0
        %1580 = vmatpush1.xpose.msra.mxu0 %v632
        %1581 = vmatprep.subr.mxu0 0.0
        %1582 = vmatpush2.xpose.msra.mxu0 0.0
        %1583 = vmatprep.subr.mxu0 0.0
        %1584 = vmatpush2.xpose.msra.mxu0 0.0
        %1585 = vmatprep.subr.mxu0 0.0
        %1586 = vmatpush2.xpose.msra.mxu0 0.0
        %1587 = vmatprep.subr.mxu0 0.0
        %1588 = vmatpush2.xpose.msra.mxu0 0.0
        %1589 = vmatprep.subr.mxu0 0.0
        %1590 = vmatpush2.xpose.msra.mxu0 0.0
        %1591 = vmatprep.subr.mxu0 0.0
        %1592 = vmatpush2.xpose.msra.mxu0 0.0
        %1593 = vmatprep.subr.mxu0 0.0
        %1594 = vmatpush2.xpose.msra.mxu0 0.0
        %1595 = vmatprep.subr.mxu0 0.0
        %1596 = vmatpush2.xpose.msra.mxu0 0.0
        %1597 = vmatprep.subr.mxu0 0.0
        %1598 = vmatpush2.xpose.msra.mxu0 0.0
        %1599 = vmatprep.subr.mxu0 0.0
        %1600 = vmatpush2.xpose.msra.mxu0 0.0
        %1601 = vmatprep.subr.mxu0 0.0
        %1602 = vmatpush2.xpose.msra.mxu0 0.0
        %1603 = vmatprep.subr.mxu0 0.0
        %1604 = vmatpush2.xpose.msra.mxu0 0.0
        %1605 = vmatprep.subr.mxu0 0.0
        %1606 = vmatpush2.xpose.msra.mxu0 0.0
        %1607 = vmatprep.subr.mxu0 0.0
        %1608 = vmatpush2.xpose.msra.mxu0 0.0
        %1609 = vmatprep.subr.mxu0 0.0
        %1610 = vmatpush2.xpose.msra.mxu0 0.0
        %1611 = vmatprep.subr.mxu0 0.0
        %1612 = vmatpush2.xpose.msra.mxu0 0.0
        %1613 = vmatprep.mubr.f32.mxu0 0.0
        %1614 = vmatmul.mubr.f32.gmra.mxu0 %v761
        %v1615 = vpop.f32.mrf.mxu0
        %v1616 = vadd.f32 0.0, %v1615
        %v1617 = vpop.f32.mrf.mxu0
        %1618 = vdwg.mxu0
        %1619 = vmatprep.subr.mxu0 0.0
        %1620 = vmatpush1.xpose.msra.mxu0 0.0
        %1621 = vmatprep.subr.mxu0 0.0
        %1622 = vmatpush1.xpose.msra.mxu0 0.0
        %1623 = vmatprep.subr.mxu0 0.0
        %1624 = vmatpush1.xpose.msra.mxu0 0.0
        %1625 = vmatprep.subr.mxu0 0.0
        %1626 = vmatpush1.xpose.msra.mxu0 0.0
        %1627 = vmatprep.subr.mxu0 0.0
        %1628 = vmatpush1.xpose.msra.mxu0 0.0
        %1629 = vmatprep.subr.mxu0 0.0
        %1630 = vmatpush1.xpose.msra.mxu0 0.0
        %1631 = vmatprep.subr.mxu0 0.0
        %1632 = vmatpush1.xpose.msra.mxu0 0.0
        %1633 = vmatprep.subr.mxu0 0.0
        %1634 = vmatpush1.xpose.msra.mxu0 0.0
        %1635 = vmatprep.subr.mxu0 0.0
        %1636 = vmatpush1.xpose.msra.mxu0 0.0
        %1637 = vmatprep.subr.mxu0 0.0
        %1638 = vmatpush1.xpose.msra.mxu0 0.0
        %1639 = vmatprep.subr.mxu0 0.0
        %1640 = vmatpush1.xpose.msra.mxu0 0.0
        %1641 = vmatprep.subr.mxu0 0.0
        %1642 = vmatpush1.xpose.msra.mxu0 0.0
        %1643 = vmatprep.subr.mxu0 0.0
        %1644 = vmatpush1.xpose.msra.mxu0 0.0
        %1645 = vmatprep.subr.mxu0 0.0
        %1646 = vmatpush1.xpose.msra.mxu0 0.0
        %1647 = vmatprep.subr.mxu0 0.0
        %1648 = vmatpush1.xpose.msra.mxu0 0.0
        %1649 = vmatprep.subr.mxu0 0.0
        %1650 = vmatpush1.xpose.msra.mxu0 %v637
        %1651 = vmatprep.subr.mxu0 0.0
        %1652 = vmatpush2.xpose.msra.mxu0 0.0
        %1653 = vmatprep.subr.mxu0 0.0
        %1654 = vmatpush2.xpose.msra.mxu0 0.0
        %1655 = vmatprep.subr.mxu0 0.0
        %1656 = vmatpush2.xpose.msra.mxu0 0.0
        %1657 = vmatprep.subr.mxu0 0.0
        %1658 = vmatpush2.xpose.msra.mxu0 0.0
        %1659 = vmatprep.subr.mxu0 0.0
        %1660 = vmatpush2.xpose.msra.mxu0 0.0
        %1661 = vmatprep.subr.mxu0 0.0
        %1662 = vmatpush2.xpose.msra.mxu0 0.0
        %1663 = vmatprep.subr.mxu0 0.0
        %1664 = vmatpush2.xpose.msra.mxu0 0.0
        %1665 = vmatprep.subr.mxu0 0.0
        %1666 = vmatpush2.xpose.msra.mxu0 0.0
        %1667 = vmatprep.subr.mxu0 0.0
        %1668 = vmatpush2.xpose.msra.mxu0 0.0
        %1669 = vmatprep.subr.mxu0 0.0
        %1670 = vmatpush2.xpose.msra.mxu0 0.0
        %1671 = vmatprep.subr.mxu0 0.0
        %1672 = vmatpush2.xpose.msra.mxu0 0.0
        %1673 = vmatprep.subr.mxu0 0.0
        %1674 = vmatpush2.xpose.msra.mxu0 0.0
        %1675 = vmatprep.subr.mxu0 0.0
        %1676 = vmatpush2.xpose.msra.mxu0 0.0
        %1677 = vmatprep.subr.mxu0 0.0
        %1678 = vmatpush2.xpose.msra.mxu0 0.0
        %1679 = vmatprep.subr.mxu0 0.0
        %1680 = vmatpush2.xpose.msra.mxu0 0.0
        %1681 = vmatprep.subr.mxu0 0.0
        %1682 = vmatpush2.xpose.msra.mxu0 0.0
        %1683 = vmatprep.mubr.f32.mxu0 0.0
        %1684 = vmatmul.mubr.f32.gmra.mxu0 %v744
        %v1685 = vpop.f32.mrf.mxu0
        %v1686 = vadd.f32 0.0, %v1685
        %v1687 = vpop.f32.mrf.mxu0
        %1688 = vdwg.mxu0
        %1689 = vmatprep.subr.mxu0 0.0
        %1690 = vmatpush1.xpose.msra.mxu0 0.0
        %1691 = vmatprep.subr.mxu0 0.0
        %1692 = vmatpush1.xpose.msra.mxu0 0.0
        %1693 = vmatprep.subr.mxu0 0.0
        %1694 = vmatpush1.xpose.msra.mxu0 0.0
        %1695 = vmatprep.subr.mxu0 0.0
        %1696 = vmatpush1.xpose.msra.mxu0 0.0
        %1697 = vmatprep.subr.mxu0 0.0
        %1698 = vmatpush1.xpose.msra.mxu0 0.0
        %1699 = vmatprep.subr.mxu0 0.0
        %1700 = vmatpush1.xpose.msra.mxu0 0.0
        %1701 = vmatprep.subr.mxu0 0.0
        %1702 = vmatpush1.xpose.msra.mxu0 0.0
        %1703 = vmatprep.subr.mxu0 0.0
        %1704 = vmatpush1.xpose.msra.mxu0 0.0
        %1705 = vmatprep.subr.mxu0 0.0
        %1706 = vmatpush1.xpose.msra.mxu0 0.0
        %1707 = vmatprep.subr.mxu0 0.0
        %1708 = vmatpush1.xpose.msra.mxu0 0.0
        %1709 = vmatprep.subr.mxu0 0.0
        %1710 = vmatpush1.xpose.msra.mxu0 0.0
        %1711 = vmatprep.subr.mxu0 0.0
        %1712 = vmatpush1.xpose.msra.mxu0 0.0
        %1713 = vmatprep.subr.mxu0 0.0
        %1714 = vmatpush1.xpose.msra.mxu0 0.0
        %1715 = vmatprep.subr.mxu0 0.0
        %1716 = vmatpush1.xpose.msra.mxu0 0.0
        %1717 = vmatprep.subr.mxu0 0.0
        %1718 = vmatpush1.xpose.msra.mxu0 0.0
        %1719 = vmatprep.subr.mxu0 0.0
        %1720 = vmatpush1.xpose.msra.mxu0 %v642
        %1721 = vmatprep.subr.mxu0 0.0
        %1722 = vmatpush2.xpose.msra.mxu0 0.0
        %1723 = vmatprep.subr.mxu0 0.0
        %1724 = vmatpush2.xpose.msra.mxu0 0.0
        %1725 = vmatprep.subr.mxu0 0.0
        %1726 = vmatpush2.xpose.msra.mxu0 0.0
        %1727 = vmatprep.subr.mxu0 0.0
        %1728 = vmatpush2.xpose.msra.mxu0 0.0
        %1729 = vmatprep.subr.mxu0 0.0
        %1730 = vmatpush2.xpose.msra.mxu0 0.0
        %1731 = vmatprep.subr.mxu0 0.0
        %1732 = vmatpush2.xpose.msra.mxu0 0.0
        %1733 = vmatprep.subr.mxu0 0.0
        %1734 = vmatpush2.xpose.msra.mxu0 0.0
        %1735 = vmatprep.subr.mxu0 0.0
        %1736 = vmatpush2.xpose.msra.mxu0 0.0
        %1737 = vmatprep.subr.mxu0 0.0
        %1738 = vmatpush2.xpose.msra.mxu0 0.0
        %1739 = vmatprep.subr.mxu0 0.0
        %1740 = vmatpush2.xpose.msra.mxu0 0.0
        %1741 = vmatprep.subr.mxu0 0.0
        %1742 = vmatpush2.xpose.msra.mxu0 0.0
        %1743 = vmatprep.subr.mxu0 0.0
        %1744 = vmatpush2.xpose.msra.mxu0 0.0
        %1745 = vmatprep.subr.mxu0 0.0
        %1746 = vmatpush2.xpose.msra.mxu0 0.0
        %1747 = vmatprep.subr.mxu0 0.0
        %1748 = vmatpush2.xpose.msra.mxu0 0.0
        %1749 = vmatprep.subr.mxu0 0.0
        %1750 = vmatpush2.xpose.msra.mxu0 0.0
        %1751 = vmatprep.subr.mxu0 0.0
        %1752 = vmatpush2.xpose.msra.mxu0 0.0
        %1753 = vmatprep.mubr.f32.mxu0 0.0
        %1754 = vmatmul.mubr.f32.gmra.mxu0 %v758
        %v1755 = vpop.f32.mrf.mxu0
        %v1756 = vadd.f32 0.0, %v1755
        %v1757 = vpop.f32.mrf.mxu0
        %1758 = vdwg.mxu0
        %1759 = vmatprep.subr.mxu0 0.0
        %1760 = vmatpush1.xpose.msra.mxu0 0.0
        %1761 = vmatprep.subr.mxu0 0.0
        %1762 = vmatpush1.xpose.msra.mxu0 0.0
        %1763 = vmatprep.subr.mxu0 0.0
        %1764 = vmatpush1.xpose.msra.mxu0 0.0
        %1765 = vmatprep.subr.mxu0 0.0
        %1766 = vmatpush1.xpose.msra.mxu0 0.0
        %1767 = vmatprep.subr.mxu0 0.0
        %1768 = vmatpush1.xpose.msra.mxu0 0.0
        %1769 = vmatprep.subr.mxu0 0.0
        %1770 = vmatpush1.xpose.msra.mxu0 0.0
        %1771 = vmatprep.subr.mxu0 0.0
        %1772 = vmatpush1.xpose.msra.mxu0 0.0
        %1773 = vmatprep.subr.mxu0 0.0
        %1774 = vmatpush1.xpose.msra.mxu0 0.0
        %1775 = vmatprep.subr.mxu0 0.0
        %1776 = vmatpush1.xpose.msra.mxu0 0.0
        %1777 = vmatprep.subr.mxu0 0.0
        %1778 = vmatpush1.xpose.msra.mxu0 0.0
        %1779 = vmatprep.subr.mxu0 0.0
        %1780 = vmatpush1.xpose.msra.mxu0 0.0
        %1781 = vmatprep.subr.mxu0 0.0
        %1782 = vmatpush1.xpose.msra.mxu0 0.0
        %1783 = vmatprep.subr.mxu0 0.0
        %1784 = vmatpush1.xpose.msra.mxu0 0.0
        %1785 = vmatprep.subr.mxu0 0.0
        %1786 = vmatpush1.xpose.msra.mxu0 0.0
        %1787 = vmatprep.subr.mxu0 0.0
        %1788 = vmatpush1.xpose.msra.mxu0 0.0
        %1789 = vmatprep.subr.mxu0 0.0
        %1790 = vmatpush1.xpose.msra.mxu0 %v647
        %1791 = vmatprep.subr.mxu0 0.0
        %1792 = vmatpush2.xpose.msra.mxu0 0.0
        %1793 = vmatprep.subr.mxu0 0.0
        %1794 = vmatpush2.xpose.msra.mxu0 0.0
        %1795 = vmatprep.subr.mxu0 0.0
        %1796 = vmatpush2.xpose.msra.mxu0 0.0
        %1797 = vmatprep.subr.mxu0 0.0
        %1798 = vmatpush2.xpose.msra.mxu0 0.0
        %1799 = vmatprep.subr.mxu0 0.0
        %1800 = vmatpush2.xpose.msra.mxu0 0.0
        %1801 = vmatprep.subr.mxu0 0.0
        %1802 = vmatpush2.xpose.msra.mxu0 0.0
        %1803 = vmatprep.subr.mxu0 0.0
        %1804 = vmatpush2.xpose.msra.mxu0 0.0
        %1805 = vmatprep.subr.mxu0 0.0
        %1806 = vmatpush2.xpose.msra.mxu0 0.0
        %1807 = vmatprep.subr.mxu0 0.0
        %1808 = vmatpush2.xpose.msra.mxu0 0.0
        %1809 = vmatprep.subr.mxu0 0.0
        %1810 = vmatpush2.xpose.msra.mxu0 0.0
        %1811 = vmatprep.subr.mxu0 0.0
        %1812 = vmatpush2.xpose.msra.mxu0 0.0
        %1813 = vmatprep.subr.mxu0 0.0
        %1814 = vmatpush2.xpose.msra.mxu0 0.0
        %1815 = vmatprep.subr.mxu0 0.0
        %1816 = vmatpush2.xpose.msra.mxu0 0.0
        %1817 = vmatprep.subr.mxu0 0.0
        %1818 = vmatpush2.xpose.msra.mxu0 0.0
        %1819 = vmatprep.subr.mxu0 0.0
        %1820 = vmatpush2.xpose.msra.mxu0 0.0
        %1821 = vmatprep.subr.mxu0 0.0
        %1822 = vmatpush2.xpose.msra.mxu0 0.0
        %1823 = vmatprep.mubr.f32.mxu0 0.0
        %1824 = vmatmul.mubr.f32.gmra.mxu0 %v760
        %v1825 = vpop.f32.mrf.mxu0
        %v1826 = vadd.f32 0.0, %v1825
        %v1827 = vpop.f32.mrf.mxu0
        %1828 = vdwg.mxu0
        %1829 = vmatprep.subr.mxu0 0.0
        %1830 = vmatpush1.xpose.msra.mxu0 0.0
        %1831 = vmatprep.subr.mxu0 0.0
        %1832 = vmatpush1.xpose.msra.mxu0 0.0
        %1833 = vmatprep.subr.mxu0 0.0
        %1834 = vmatpush1.xpose.msra.mxu0 0.0
        %1835 = vmatprep.subr.mxu0 0.0
        %1836 = vmatpush1.xpose.msra.mxu0 0.0
        %1837 = vmatprep.subr.mxu0 0.0
        %1838 = vmatpush1.xpose.msra.mxu0 0.0
        %1839 = vmatprep.subr.mxu0 0.0
        %1840 = vmatpush1.xpose.msra.mxu0 0.0
        %1841 = vmatprep.subr.mxu0 0.0
        %1842 = vmatpush1.xpose.msra.mxu0 0.0
        %1843 = vmatprep.subr.mxu0 0.0
        %1844 = vmatpush1.xpose.msra.mxu0 0.0
        %1845 = vmatprep.subr.mxu0 0.0
        %1846 = vmatpush1.xpose.msra.mxu0 0.0
        %1847 = vmatprep.subr.mxu0 0.0
        %1848 = vmatpush1.xpose.msra.mxu0 0.0
        %1849 = vmatprep.subr.mxu0 0.0
        %1850 = vmatpush1.xpose.msra.mxu0 0.0
        %1851 = vmatprep.subr.mxu0 0.0
        %1852 = vmatpush1.xpose.msra.mxu0 0.0
        %1853 = vmatprep.subr.mxu0 0.0
        %1854 = vmatpush1.xpose.msra.mxu0 0.0
        %1855 = vmatprep.subr.mxu0 0.0
        %1856 = vmatpush1.xpose.msra.mxu0 0.0
        %1857 = vmatprep.subr.mxu0 0.0
        %1858 = vmatpush1.xpose.msra.mxu0 0.0
        %1859 = vmatprep.subr.mxu0 0.0
        %1860 = vmatpush1.xpose.msra.mxu0 %v652
        %1861 = vmatprep.subr.mxu0 0.0
        %1862 = vmatpush2.xpose.msra.mxu0 0.0
        %1863 = vmatprep.subr.mxu0 0.0
        %1864 = vmatpush2.xpose.msra.mxu0 0.0
        %1865 = vmatprep.subr.mxu0 0.0
        %1866 = vmatpush2.xpose.msra.mxu0 0.0
        %1867 = vmatprep.subr.mxu0 0.0
        %1868 = vmatpush2.xpose.msra.mxu0 0.0
        %1869 = vmatprep.subr.mxu0 0.0
        %1870 = vmatpush2.xpose.msra.mxu0 0.0
        %1871 = vmatprep.subr.mxu0 0.0
        %1872 = vmatpush2.xpose.msra.mxu0 0.0
        %1873 = vmatprep.subr.mxu0 0.0
        %1874 = vmatpush2.xpose.msra.mxu0 0.0
        %1875 = vmatprep.subr.mxu0 0.0
        %1876 = vmatpush2.xpose.msra.mxu0 0.0
        %1877 = vmatprep.subr.mxu0 0.0
        %1878 = vmatpush2.xpose.msra.mxu0 0.0
        %1879 = vmatprep.subr.mxu0 0.0
        %1880 = vmatpush2.xpose.msra.mxu0 0.0
        %1881 = vmatprep.subr.mxu0 0.0
        %1882 = vmatpush2.xpose.msra.mxu0 0.0
        %1883 = vmatprep.subr.mxu0 0.0
        %1884 = vmatpush2.xpose.msra.mxu0 0.0
        %1885 = vmatprep.subr.mxu0 0.0
        %1886 = vmatpush2.xpose.msra.mxu0 0.0
        %1887 = vmatprep.subr.mxu0 0.0
        %1888 = vmatpush2.xpose.msra.mxu0 0.0
        %1889 = vmatprep.subr.mxu0 0.0
        %1890 = vmatpush2.xpose.msra.mxu0 0.0
        %1891 = vmatprep.subr.mxu0 0.0
        %1892 = vmatpush2.xpose.msra.mxu0 0.0
        %1893 = vmatprep.mubr.f32.mxu0 0.0
        %1894 = vmatmul.mubr.f32.gmra.mxu0 %v762
        %v1895 = vpop.f32.mrf.mxu0
        %v1896 = vadd.f32 0.0, %v1895
        %v1897 = vpop.f32.mrf.mxu0
        %1898 = vdwg.mxu0
        %v1899 = vmul.f32 %v577, %v577
        %v1900 = vmul.f32 %v582, %v582
        %v1901 = vmul.f32 %v587, %v587
        %v1902 = vmul.f32 %v592, %v592
        %v1903 = vmul.f32 %v597, %v597
        %v1904 = vmul.f32 %v602, %v602
        %v1905 = vmul.f32 %v607, %v607
        %v1906 = vmul.f32 %v612, %v612
        %v1907 = vmul.f32 %v617, %v617
        %v1908 = vmul.f32 %v622, %v622
        %v1909 = vmul.f32 %v627, %v627
        %v1910 = vmul.f32 %v632, %v632
        %v1911 = vmul.f32 %v637, %v637
        %v1912 = vmul.f32 %v642, %v642
        %v1913 = vmul.f32 %v647, %v647
        %v1914 = vmul.f32 %v652, %v652
        %1915 = vadd.xlane.f32.xlu0 %v1899
        %v1916 = vpop.xlane.xlu0 %1915
        %1917 = vadd.xlane.f32.xlu0 %v1900
        %v1918 = vpop.xlane.xlu0 %1917
        %1919 = vadd.xlane.f32.xlu0 %v1901
        %v1920 = vpop.xlane.xlu0 %1919
        %1921 = vadd.xlane.f32.xlu0 %v1902
        %v1922 = vpop.xlane.xlu0 %1921
        %1923 = vadd.xlane.f32.xlu0 %v1903
        %v1924 = vpop.xlane.xlu0 %1923
        %1925 = vadd.xlane.f32.xlu0 %v1904
        %v1926 = vpop.xlane.xlu0 %1925
        %1927 = vadd.xlane.f32.xlu0 %v1905
        %v1928 = vpop.xlane.xlu0 %1927
        %1929 = vadd.xlane.f32.xlu0 %v1906
        %v1930 = vpop.xlane.xlu0 %1929
        %1931 = vadd.xlane.f32.xlu0 %v1907
        %v1932 = vpop.xlane.xlu0 %1931
        %1933 = vadd.xlane.f32.xlu0 %v1908
        %v1934 = vpop.xlane.xlu0 %1933
        %1935 = vadd.xlane.f32.xlu0 %v1909
        %v1936 = vpop.xlane.xlu0 %1935
        %1937 = vadd.xlane.f32.xlu0 %v1910
        %v1938 = vpop.xlane.xlu0 %1937
        %1939 = vadd.xlane.f32.xlu0 %v1911
        %v1940 = vpop.xlane.xlu0 %1939
        %1941 = vadd.xlane.f32.xlu0 %v1912
        %v1942 = vpop.xlane.xlu0 %1941
        %1943 = vadd.xlane.f32.xlu0 %v1913
        %v1944 = vpop.xlane.xlu0 %1943
        %1945 = vadd.xlane.f32.xlu0 %v1914
        %v1946 = vpop.xlane.xlu0 %1945
        %v1947 = vrsqrt.pop %v1916
        %v1948 = vrsqrt.pop %v1918
        %v1949 = vrsqrt.pop %v1920
        %v1950 = vrsqrt.pop %v1922
        %v1951 = vrsqrt.pop %v1924
        %v1952 = vrsqrt.pop %v1926
        %v1953 = vrsqrt.pop %v1928
        %v1954 = vrsqrt.pop %v1930
        %v1955 = vrsqrt.pop %v1932
        %v1956 = vrsqrt.pop %v1934
        %v1957 = vrsqrt.pop %v1936
        %v1958 = vrsqrt.pop %v1938
        %v1959 = vrsqrt.pop %v1940
        %v1960 = vrsqrt.pop %v1942
        %v1961 = vrsqrt.pop %v1944
        %v1962 = vrsqrt.pop %v1946
        %v1965 = vrot.slane %v661, 1
        %v1966 = vrot.slane %v661, 2
        %v1967 = vrot.slane %v661, 3
        %v1968 = vrot.slane %v661, 4
        %v1969 = vrot.slane %v661, 5
        %v1970 = vrot.slane %v661, 6
        %v1971 = vrot.slane %v661, 7
        %v1972 = vrot.slane %v662, 1
        %v1973 = vrot.slane %v662, 2
        %v1974 = vrot.slane %v662, 3
        %v1975 = vrot.slane %v662, 4
        %v1976 = vrot.slane %v662, 5
        %v1977 = vrot.slane %v662, 6
        %v1978 = vrot.slane %v662, 7
        %v1995 = vmul.f32 %v846, %v661
        %v1996 = vmul.f32 %v916, %v1965
        %v1997 = vmul.f32 %v986, %v1966
        %v1998 = vmul.f32 %v1056, %v1967
        %v1999 = vmul.f32 %v1126, %v1968
        %v2000 = vmul.f32 %v1196, %v1969
        %v2001 = vmul.f32 %v1266, %v1970
        %v2002 = vmul.f32 %v1336, %v1971
        %v2003 = vmul.f32 %v1406, %v662
        %v2004 = vmul.f32 %v1476, %v1972
        %v2005 = vmul.f32 %v1546, %v1973
        %v2006 = vmul.f32 %v1616, %v1974
        %v2007 = vmul.f32 %v1686, %v1975
        %v2008 = vmul.f32 %v1756, %v1976
        %v2009 = vmul.f32 %v1826, %v1977
        %v2010 = vmul.f32 %v1896, %v1978
        %v2027 = vlaneseq
        %v2028 = vshrl.u32 %v2027, 7
        %v2029 = vsub.s32 %v255, %v2028
        %v2030 = vrot.slane %v1947, %v2029
        %v2031 = vlaneseq
        %v2032 = vshrl.u32 %v2031, 7
        %v2033 = vsub.s32 %v255, %v2032
        %v2034 = vrot.slane %v1948, %v2033
        %v2035 = vlaneseq
        %v2036 = vshrl.u32 %v2035, 7
        %v2037 = vsub.s32 %v255, %v2036
        %v2038 = vrot.slane %v1949, %v2037
        %v2039 = vlaneseq
        %v2040 = vshrl.u32 %v2039, 7
        %v2041 = vsub.s32 %v255, %v2040
        %v2042 = vrot.slane %v1950, %v2041
        %v2043 = vlaneseq
        %v2044 = vshrl.u32 %v2043, 7
        %v2045 = vsub.s32 %v255, %v2044
        %v2046 = vrot.slane %v1951, %v2045
        %v2047 = vlaneseq
        %v2048 = vshrl.u32 %v2047, 7
        %v2049 = vsub.s32 %v255, %v2048
        %v2050 = vrot.slane %v1952, %v2049
        %v2051 = vlaneseq
        %v2052 = vshrl.u32 %v2051, 7
        %v2053 = vsub.s32 %v255, %v2052
        %v2054 = vrot.slane %v1953, %v2053
        %v2055 = vlaneseq
        %v2056 = vshrl.u32 %v2055, 7
        %v2057 = vsub.s32 %v255, %v2056
        %v2058 = vrot.slane %v1954, %v2057
        %v2059 = vlaneseq
        %v2060 = vshrl.u32 %v2059, 7
        %v2061 = vsub.s32 %v255, %v2060
        %v2062 = vrot.slane %v1955, %v2061
        %v2063 = vlaneseq
        %v2064 = vshrl.u32 %v2063, 7
        %v2065 = vsub.s32 %v255, %v2064
        %v2066 = vrot.slane %v1956, %v2065
        %v2067 = vlaneseq
        %v2068 = vshrl.u32 %v2067, 7
        %v2069 = vsub.s32 %v255, %v2068
        %v2070 = vrot.slane %v1957, %v2069
        %v2071 = vlaneseq
        %v2072 = vshrl.u32 %v2071, 7
        %v2073 = vsub.s32 %v255, %v2072
        %v2074 = vrot.slane %v1958, %v2073
        %v2075 = vlaneseq
        %v2076 = vshrl.u32 %v2075, 7
        %v2077 = vsub.s32 %v255, %v2076
        %v2078 = vrot.slane %v1959, %v2077
        %v2079 = vlaneseq
        %v2080 = vshrl.u32 %v2079, 7
        %v2081 = vsub.s32 %v255, %v2080
        %v2082 = vrot.slane %v1960, %v2081
        %v2083 = vlaneseq
        %v2084 = vshrl.u32 %v2083, 7
        %v2085 = vsub.s32 %v255, %v2084
        %v2086 = vrot.slane %v1961, %v2085
        %v2087 = vlaneseq
        %v2088 = vshrl.u32 %v2087, 7
        %v2089 = vsub.s32 %v255, %v2088
        %v2090 = vrot.slane %v1962, %v2089
        %v2107 = vmul.f32 %v1995, %v2030
        %v2108 = vmul.f32 %v1996, %v2034
        %v2109 = vmul.f32 %v1997, %v2038
        %v2110 = vmul.f32 %v1998, %v2042
        %v2111 = vmul.f32 %v1999, %v2046
        %v2112 = vmul.f32 %v2000, %v2050
        %v2113 = vmul.f32 %v2001, %v2054
        %v2114 = vmul.f32 %v2002, %v2058
        %v2115 = vmul.f32 %v2003, %v2062
        %v2116 = vmul.f32 %v2004, %v2066
        %v2117 = vmul.f32 %v2005, %v2070
        %v2118 = vmul.f32 %v2006, %v2074
        %v2119 = vmul.f32 %v2007, %v2078
        %v2120 = vmul.f32 %v2008, %v2082
        %v2121 = vmul.f32 %v2009, %v2086
        %v2122 = vmul.f32 %v2010, %v2090
        %v2123 = vsub.f32 %v2107, 0.3
        %v2124 = vsub.f32 %v2108, 0.3
        %v2125 = vsub.f32 %v2109, 0.3
        %v2126 = vsub.f32 %v2110, 0.3
        %v2127 = vsub.f32 %v2111, 0.3
        %v2128 = vsub.f32 %v2112, 0.3
        %v2129 = vsub.f32 %v2113, 0.3
        %v2130 = vsub.f32 %v2114, 0.3
        %v2131 = vsub.f32 %v2115, 0.3
        %v2132 = vsub.f32 %v2116, 0.3
        %v2133 = vsub.f32 %v2117, 0.3
        %v2134 = vsub.f32 %v2118, 0.3
        %v2135 = vsub.f32 %v2119, 0.3
        %v2136 = vsub.f32 %v2120, 0.3
        %v2137 = vsub.f32 %v2121, 0.3
        %v2138 = vsub.f32 %v2122, 0.3
        %v2139 = vmax.f32 %v2123, 0.0
        %v2140 = vmax.f32 %v2124, 0.0
        %v2141 = vmax.f32 %v2125, 0.0
        %v2142 = vmax.f32 %v2126, 0.0
        %v2143 = vmax.f32 %v2127, 0.0
        %v2144 = vmax.f32 %v2128, 0.0
        %v2145 = vmax.f32 %v2129, 0.0
        %v2146 = vmax.f32 %v2130, 0.0
        %v2147 = vmax.f32 %v2131, 0.0
        %v2148 = vmax.f32 %v2132, 0.0
        %v2149 = vmax.f32 %v2133, 0.0
        %v2150 = vmax.f32 %v2134, 0.0
        %v2151 = vmax.f32 %v2135, 0.0
        %v2152 = vmax.f32 %v2136, 0.0
        %v2153 = vmax.f32 %v2137, 0.0
        %v2154 = vmax.f32 %v2138, 0.0
        %v2171 = vrot.slane %v2140, 7
        %vm2172 = vcmask 1041409
        %v2173 = vsel %vm2172, %v2171, %v2139
        %v2174 = vrot.slane %v2141, 6
        %vm2175 = vcmask 1042434
        %v2176 = vsel %vm2175, %v2174, %v2173
        %v2177 = vrot.slane %v2142, 5
        %vm2178 = vcmask 1043459
        %v2179 = vsel %vm2178, %v2177, %v2176
        %v2180 = vrot.slane %v2143, 4
        %vm2181 = vcmask 1044484
        %v2182 = vsel %vm2181, %v2180, %v2179
        %v2183 = vrot.slane %v2144, 3
        %vm2184 = vcmask 1045509
        %v2185 = vsel %vm2184, %v2183, %v2182
        %v2186 = vrot.slane %v2145, 2
        %vm2187 = vcmask 1046534
        %v2188 = vsel %vm2187, %v2186, %v2185
        %v2189 = vrot.slane %v2146, 1
        %vm2190 = vcmask 1047559
        %v2191 = vsel %vm2190, %v2189, %v2188
        %v2192 = vrot.slane %v2148, 7
        %v2193 = vsel %vm2172, %v2192, %v2147
        %v2194 = vrot.slane %v2149, 6
        %v2195 = vsel %vm2175, %v2194, %v2193
        %v2196 = vrot.slane %v2150, 5
        %v2197 = vsel %vm2178, %v2196, %v2195
        %v2198 = vrot.slane %v2151, 4
        %v2199 = vsel %vm2181, %v2198, %v2197
        %v2200 = vrot.slane %v2152, 3
        %v2201 = vsel %vm2184, %v2200, %v2199
        %v2202 = vrot.slane %v2153, 2
        %v2203 = vsel %vm2187, %v2202, %v2201
        %v2204 = vrot.slane %v2154, 1
        %v2205 = vsel %vm2190, %v2204, %v2203
        %vm2208 = vcmask 64512
        %v2209 = vsel %vm2208, %v2191, 0.0
        %v2210 = vsel %vm2208, %v2205, 0.0
        %v2211 = vadd.f32 %v2209, %v2210
        %2212 = vadd.xlane.f32.xlu0 %v2211
        %v2213 = vpop.xlane.xlu0 %2212
        %v2214 = vrot.slane %v2213, 4
        %v2215 = vadd.f32 %v2213, %v2214
        %v2216 = vrot.slane %v2215, 2
        %v2217 = vadd.f32 %v2215, %v2216
        %v2218 = vrot.slane %v2217, 1
        %v2219 = vadd.f32 %v2217, %v2218
        %s2220 = vtos %v2219
        %s2221 = smul.f32 %s2220, 0.00390625
        %v2222 = vmul.f32 %v342, %v242
        %v2223 = vmul.f32 %v347, %v243
        %2224 = vadd.xlane.f32.xlu0 %v2222
        %v2225 = vpop.xlane.xlu0 %2224
        %2226 = vadd.xlane.f32.xlu0 %v2223
        %v2227 = vpop.xlane.xlu0 %2226
        %v2228 = vand.u32 2147483647, %v342
        %v2229 = vand.u32 2147483647, %v347
        %2230 = vadd.xlane.f32.xlu0 %v2228
        %v2231 = vpop.xlane.xlu0 %2230
        %2232 = vadd.xlane.f32.xlu0 %v2229
        %v2233 = vpop.xlane.xlu0 %2232
        %v2234 = vrcp.pop %v2231
        %v2235 = vrcp.pop %v2233
        %v2236 = vmul.f32 %v2225, %v2234
        %v2237 = vmul.f32 %v2227, %v2235
        %v2238 = vmul.f32 %v2236, %v661
        %v2239 = vmul.f32 %v2237, %v662
        %v2240 = vsub.f32 1.0, %v2238
        %v2241 = vsub.f32 1.0, %v2239
        %vm2242 = vcmask 7168
        %v2243 = vsel %vm2242, %v2240, 0.0
        %v2244 = vsel %vm2242, %v2241, 0.0
        %v2245 = vadd.f32 %v2243, %v2244
        %2246 = vadd.xlane.f32.xlu0 %v2245
        %v2247 = vpop.xlane.xlu0 %2246
        %v2248 = vrot.slane %v2247, 4
        %v2249 = vadd.f32 %v2247, %v2248
        %v2250 = vrot.slane %v2249, 2
        %v2251 = vadd.f32 %v2249, %v2250
        %v2252 = vrot.slane %v2251, 1
        %v2253 = vadd.f32 %v2251, %v2252
        %s2254 = vtos %v2253
        %s2255 = smul.f32 %s2254, 0.03125
        %s2256 = sadd.f32 %s2255, %s2221
        %v2257 = vstv %s2256
        %2258 = vst [vmem:[%s223] sm:$0xff] %v2257
        %s2259 = sand.u32 %s125, 1
        %s2260 = scalar_lea.sflag [#allocation3], %s2259
        %s2261 = sand.u32 %s125, 1
        %s2262 = smul.addr %s2261, 8
        %s2263 = scalar_lea.vmem [#allocation2], %s2262
        // Predicated region
        $region37: #{tpu_custom_call.1} parent=35 // pred_check
          %p2264 = pneg %p135
        $region38: #{tpu_custom_call.1} parent=35 // pred_check_branch
          %2266 = sbr.rel (%p2264) target = $region40
        $region39: #{tpu_custom_call.1} parent=35 // pred_region
          %s2268 = ssub.s32 128, 128
          %2269 = vsyncadd %s2260, %s2268
          %s2270 = smul.addr %s18, 128
          %s2271 = scalar_lea.hbm %s4, %s2270
          %s2273 = sshll.u32 %s2263, 4
          %s2274 = int_to_ptr.vmem [resolvable:$true] %s2273
          %2276 = dma.vmem_to_hbm [thread:$0]  %s2274, 128, %s2271, %s2260
        $region40: #{tpu_custom_call.1} parent=35 // pred_fallthru
          _
      $region36: #{tpu_custom_call.1} parent=5 // pred_fallthru
        _
      %p2277 = scmp.le.s32.totalorder 2, %s13
      // Predicated region
      $region41: #{tpu_custom_call.1} parent=5 // pred_check
        %p2278 = pneg %p2277
      $region42: #{tpu_custom_call.1} parent=5 // pred_check_branch
        %2280 = sbr.rel (%p2278) target = $region44
      $region43: #{tpu_custom_call.1} parent=5 // pred_region
        %s2281 = ssub.s32 %s13, 2
        // Predicated region
        $region45: #{tpu_custom_call.1} parent=43 // pred_check
          %p2282 = pneg %p141
        $region46: #{tpu_custom_call.1} parent=43 // pred_check_branch
          %2284 = sbr.rel (%p2282) target = $region48
        $region47: #{tpu_custom_call.1} parent=43 // pred_region
          %s2285 = sand.u32 %s126, 1
          %s2286 = scalar_lea.sflag [#allocation3], %s2285
          %s2287 = sand.u32 %s126, 1
          %s2288 = smul.addr %s2287, 8
          %s2289 = scalar_lea.vmem [#allocation2], %s2288
          %2290 = dma.done %s2286, 128
        $region48: #{tpu_custom_call.1} parent=43 // pred_fallthru
          _
      $region44: #{tpu_custom_call.1} parent=5 // pred_fallthru
        _
    $region6: #{tpu_custom_call.1} parent=1 // loop_footer
      %s17 = sadd.s32 1, %s13
    $region7: #{tpu_custom_call.1} parent=1 // loop_footer_branch
      %12 = sbr.rel target = $region3
    $region8: #{tpu_custom_call.1} parent=1 // loop_exit
      _
    %2291 = vsyncpa [#allocation3], 1
    %s2292 = scalar_lea.sflag [#allocation3], 1
    %2293 = vsyncpa %s2292, 1

</llo_original>
